<compile_context>
chip_gen: v6e
topology: v6e:2x2x1
jax: 0.10.0
libtpu: 0.0.40
codegen_flags: <defaults>
</compile_context>

<pallas_src>
import functools

import jax
import jax.numpy as jnp
from jax.experimental import pallas as pl
from jax.experimental.pallas import tpu as pltpu


def _round_up(x, m):
    return ((x + m - 1) // m) * m


# ----------------------------- Pallas kernel ------------------------------ #

def cheb_conv_kernel(l_ref, xk_ref, x0_ref, w_ref, b_ref, o_ref, lx_acc,
                     *, apply_relu, stacked, f_in_pad):
    """One ChebConv layer (K=2), tiled over node rows (i) and L columns (k).

    l_ref  : (tile_n, tile_k)   block of L_hat                 (bf16)
    xk_ref : (tile_k, F_in)     X rows feeding the T1 matmul   (bf16)
    x0_ref : (tile_n, F_in)     X rows of this tile (T0 term)  (bf16)
    w_ref  : (2*F_in, F_out)    [W0; W1] stacked               (bf16)
    b_ref  : (1, F_out)         bias                           (f32)
    o_ref  : (tile_n, F_out)
    lx_acc : (tile_n, F_in)     f32 scratch accumulator for L_hat @ X
    """
    k = pl.program_id(1)

    @pl.when(k == 0)
    def _():
        lx_acc[...] = jnp.zeros_like(lx_acc)

    # T1 partial product: (tile_n, tile_k) @ (tile_k, F_in) on the MXU,
    # f32 accumulation across the k grid axis.
    lx_acc[...] += jnp.dot(l_ref[...], xk_ref[...],
                           preferred_element_type=jnp.float32)

    @pl.when(k == pl.num_programs(1) - 1)
    def _():
        xt = x0_ref[...]
        lx = lx_acc[...].astype(xt.dtype)
        if stacked:
            # v6e/v7x: single 2*F_in-deep MXU pass on [X_tile | L@X_tile].
            z = jnp.concatenate([xt, lx], axis=-1)
            out = jnp.dot(z, w_ref[...], preferred_element_type=jnp.float32)
        else:
            # v5e: MXU is natively 128-deep; two dots avoid the concat copy.
            out = jnp.dot(xt, w_ref[:f_in_pad, :],
                          preferred_element_type=jnp.float32)
            out = out + jnp.dot(lx, w_ref[f_in_pad:, :],
                                preferred_element_type=jnp.float32)
        out = out + b_ref[...]                 # f32 elementwise (v5e-safe)
        if apply_relu:
            out = jnp.maximum(out, 0.0)
        o_ref[...] = out.astype(o_ref.dtype)


def cheb_conv(l_hat, x, w_stacked, bias, *, tile_n, tile_k, apply_relu,
              stacked, out_dtype, vmem_limit_bytes):
    """pallas_call for one ChebConv(K=2) layer, tiled (rows x L-columns).

    Inputs must already be padded: n_pad % tile_n == n_pad % tile_k == 0,
    tile_n/tile_k/feature dims all multiples of 128 (lane-dense blocks).
    """
    n_pad, f_in = x.shape
    f_out = w_stacked.shape[1]
    assert l_hat.shape == (n_pad, n_pad)
    assert n_pad % tile_n == 0 and n_pad % tile_k == 0
    assert tile_n % 128 == 0 and tile_k % 128 == 0
    assert f_in % 128 == 0 and f_out % 128 == 0
    assert w_stacked.shape[0] == 2 * f_in

    kernel = functools.partial(cheb_conv_kernel, apply_relu=apply_relu,
                               stacked=stacked, f_in_pad=f_in)
    return pl.pallas_call(
        kernel,
        out_shape=jax.ShapeDtypeStruct((n_pad, f_out), out_dtype),
        grid_spec=pltpu.PrefetchScalarGridSpec(
            num_scalar_prefetch=0,
            grid=(n_pad // tile_n, n_pad // tile_k),   # reduction axis last
            in_specs=[
                pl.BlockSpec((tile_n, tile_k), lambda i, k: (i, k)),   # L_hat
                pl.BlockSpec((tile_k, f_in), lambda i, k: (k, 0)),     # X (T1)
                pl.BlockSpec((tile_n, f_in), lambda i, k: (i, 0)),     # X (T0)
                pl.BlockSpec((2 * f_in, f_out), lambda i, k: (0, 0)),  # [W0;W1]
                pl.BlockSpec((1, f_out), lambda i, k: (0, 0)),         # bias
            ],
            out_specs=pl.BlockSpec((tile_n, f_out), lambda i, k: (i, 0)),
            scratch_shapes=[pltpu.VMEM((tile_n, f_in), jnp.float32)],
        ),
        compiler_params=pltpu.CompilerParams(
            dimension_semantics=("parallel", "arbitrary"),
            vmem_limit_bytes=int(vmem_limit_bytes),
        ),
    )(l_hat, x, x, w_stacked, bias)


# --------------------- generation-aware tiling / budgets -------------------- #

def _tpu_kind():
    try:
        return jax.devices()[0].device_kind.lower()
    except Exception:
        return ""


def _vmem_capacity_bytes(kind):
    try:
        return int(pltpu.get_tpu_info().vmem_capacity_bytes)
    except Exception:
        return (64 << 20) if "v7" in kind else (128 << 20)


def _pick_tile_n(n, kind):
    """Row-tile size: multiple of 128; cap 256 and >=4 row tiles on v7x
    (>=2 per TensorCore so L-tile DMAs can double-buffer per core), cap 512
    on v5e/v6e (128 MiB VMEM, fewer 0.35us grid-step overheads)."""
    n128 = _round_up(max(n, 1), 128)
    is_v7 = "v7" in kind
    cap = 256 if is_v7 else 512
    min_tiles = 4 if is_v7 else 1
    for t in (512, 256, 128):
        if t <= cap and t <= n128 and -(-n128 // t) >= min_tiles:
            return t
    return 128


def _vmem_estimate(tile_n, tile_k, f_in_p, f_out_p, out_itemsize):
    by = 2 * tile_n * tile_k * 2            # L block, double-buffered, bf16
    by += 2 * tile_k * f_in_p * 2           # X column block (T1 stream)
    by += 2 * tile_n * f_in_p * 2           # X row block (T0 term)
    by += 2 * (2 * f_in_p) * f_out_p * 2    # stacked weights
    by += 2 * f_out_p * 4                   # bias
    by += 2 * tile_n * f_out_p * out_itemsize
    by += tile_n * f_in_p * 4               # f32 accumulator scratch
    return by


def _pick_tile_k(n_pad, tile_n, f_in_p, f_out_p, out_itemsize, budget):
    """Largest 128-multiple divisor of n_pad whose working set fits budget."""
    cands = {n_pad}
    t = 128
    while t < n_pad:
        if n_pad % t == 0:
            cands.add(t)
        t *= 2
    for tk in sorted(cands, reverse=True):
        if _vmem_estimate(tile_n, tk, f_in_p, f_out_p, out_itemsize) <= budget:
            return tk
    return 128


# ------------------------------- glue (JAX) -------------------------------- #

def scaled_laplacian_bf16(adj, n_pad):
    """L_hat = 2/lambda_max*(I - D^-1/2 A D^-1/2) - I with lambda_max=2
             = -D^-1/2 A D^-1/2 (torch_geometric ChebConv default),
    written directly at padded size in bf16 (no f32 N*N HBM intermediate)."""
    n = adj.shape[0]
    deg = jnp.sum(adj, axis=-1)
    dinv = jnp.where(deg > 0, 1.0 / jnp.sqrt(deg), 0.0)
    l_bf16 = (-(dinv[:, None] * adj * dinv[None, :])).astype(jnp.bfloat16)
    if n_pad == n:
        return l_bf16
    out = jnp.zeros((n_pad, n_pad), jnp.bfloat16)
    return out.at[:n, :n].set(l_bf16)


def _pad2(a, rows, cols, dtype):
    out = jnp.zeros((rows, cols), dtype)
    return out.at[:a.shape[0], :a.shape[1]].set(a.astype(dtype))


def _stack_weights(w0, w1, f_in_pad, f_out_pad):
    f_in, f_out = w0.shape
    w = jnp.zeros((2 * f_in_pad, f_out_pad), jnp.float32)
    w = w.at[:f_in, :f_out].set(w0)
    w = w.at[f_in_pad:f_in_pad + f_in, :f_out].set(w1)
    return w.astype(jnp.bfloat16)


def cheb_gcn2_forward(x, adj, params):
    n, nfeat = x.shape
    nhid = params["w1_0"].shape[1]
    nclass = params["w2_0"].shape[1]

    kind = _tpu_kind()
    vmem_cap = _vmem_capacity_bytes(kind)
    if "v7" in kind:                       # 64 MiB per-TC VMEM
        vmem_limit = min(vmem_cap * 4 // 5, 52 << 20)
    else:                                  # v5e / v6e: 128 MiB VMEM
        vmem_limit = min(vmem_cap * 4 // 5, 100 << 20)
    budget = vmem_limit * 3 // 4
    stacked = "v5" not in kind             # v5e: two 128-deep dots, no concat

    nfeat_p = _round_up(nfeat, 128)
    nhid_p = _round_up(nhid, 128)
    nclass_p = _round_up(nclass, 128)

    tile_n = _pick_tile_n(n, kind)
    n_pad = _round_up(n, tile_n)           # multiple of 128 (tile_n is)
    tile_k = _pick_tile_k(n_pad, tile_n, max(nfeat_p, nhid_p),
                          max(nhid_p, nclass_p), 4, budget)

    l_p = scaled_laplacian_bf16(adj, n_pad)
    x_p = _pad2(x, n_pad, nfeat_p, jnp.bfloat16)

    w1 = _stack_weights(params["w1_0"], params["w1_1"], nfeat_p, nhid_p)
    b1 = _pad2(params["b1"].reshape(1, -1), 1, nhid_p, jnp.float32)
    w2 = _stack_weights(params["w2_0"], params["w2_1"], nhid_p, nclass_p)
    b2 = _pad2(params["b2"].reshape(1, -1), 1, nclass_p, jnp.float32)

    h = cheb_conv(l_p, x_p, w1, b1, tile_n=tile_n, tile_k=tile_k,
                  apply_relu=True, stacked=stacked, out_dtype=jnp.bfloat16,
                  vmem_limit_bytes=vmem_limit)
    # NOTE: padded rows n..n_pad-1 of h equal relu(b1) (not 0).  This is
    # harmless: the corresponding L_hat columns are zero-padded and those rows
    # are sliced off below; zero them explicitly if the layers are ever fused.
    # TODO(synk): F.dropout(training=True) would need PRNG masking; forward is
    # implemented in eval mode (dropout == identity).
    out = cheb_conv(l_p, h, w2, b2, tile_n=tile_n, tile_k=tile_k,
                    apply_relu=False, stacked=stacked, out_dtype=jnp.float32,
                    vmem_limit_bytes=vmem_limit)
    return out[:n, :nclass]


# ------------------------------ references --------------------------------- #

def _scaled_laplacian_f32(adj):
    deg = jnp.sum(adj, axis=-1)
    dinv = jnp.where(deg > 0, 1.0 / jnp.sqrt(deg), 0.0)
    return -(dinv[:, None] * adj * dinv[None, :])


def cheb_gcn2_reference_f32(x, adj, params):
    l_hat = _scaled_laplacian_f32(adj)
    h = x @ params["w1_0"] + (l_hat @ x) @ params["w1_1"] + params["b1"]
    h = jnp.maximum(h, 0.0)
    return h @ params["w2_0"] + (l_hat @ h) @ params["w2_1"] + params["b2"]


def cheb_gcn2_reference_bf16(x, adj, params):
    """Same bf16-input / f32-accumulate matmul policy as the kernel."""
    def mm(a, b):
        return jnp.dot(a.astype(jnp.bfloat16), b.astype(jnp.bfloat16),
                       preferred_element_type=jnp.float32)
    l_hat = _scaled_laplacian_f32(adj)
    h = mm(x, params["w1_0"]) + mm(mm(l_hat, x), params["w1_1"]) + params["b1"]
    h = jnp.maximum(h, 0.0).astype(jnp.bfloat16)
    return (mm(h, params["w2_0"]) + mm(mm(l_hat, h), params["w2_1"])
            + params["b2"])


def glorot(key, shape):
    fan_in, fan_out = shape[-2], shape[-1]
    scale = jnp.sqrt(6.0 / (fan_in + fan_out))
    return jax.random.uniform(key, shape, jnp.float32, -scale, scale)


if __name__ == "__main__":
    # Small, padding-exercising shapes (N not a multiple of 128).
    N, nfeat, nhid, nclass = 200, 48, 96, 16
    key = jax.random.PRNGKey(0)
    k_x, k_a, k10, k11, k20, k21 = jax.random.split(key, 6)

    # Node features.
    x = jax.random.normal(k_x, (N, nfeat), jnp.float32)

    # Random symmetric 0/1 adjacency, no self loops.
    a = (jax.random.uniform(k_a, (N, N)) < 0.05).astype(jnp.float32)
    adj = jnp.clip(a + a.T, 0.0, 1.0)
    adj = adj * (1.0 - jnp.eye(N, dtype=jnp.float32))

    # Parameters: ChebConv(nfeat, nhid, K=2) and ChebConv(nhid, nclass, K=2).
    params = {
        "w1_0": glorot(k10, (nfeat, nhid)),
        "w1_1": glorot(k11, (nfeat, nhid)),
        "b1": jnp.zeros((1, nhid), jnp.float32),
        "w2_0": glorot(k20, (nhid, nclass)),
        "w2_1": glorot(k21, (nhid, nclass)),
        "b2": jnp.zeros((1, nclass), jnp.float32),
    }

    out = jax.jit(cheb_gcn2_forward)(x, adj, params)
    out = jax.block_until_ready(out)
    assert out.shape == (N, nclass)

    # Tight check vs a reference using the same bf16-matmul / f32-accum policy.
    ref_bf16 = cheb_gcn2_reference_bf16(x, adj, params)
    assert jnp.allclose(out, ref_bf16, atol=2e-2, rtol=2e-2), \
        "mismatch vs bf16-matched reference"

    # Loose check vs the pure-f32 reference (bf16 quantisation error budget).
    ref_f32 = cheb_gcn2_reference_f32(x, adj, params)
    assert jnp.allclose(out, ref_f32, atol=1e-1, rtol=1e-1), \
        "mismatch vs f32 reference"

    print("KERNEL_OK")
</pallas_src>

<mosaic_0001>
module attributes {stable_mosaic.version = 11 : i64} {
  func.func @cheb_conv_kernel(%arg0: i32, %arg1: i32, %arg2: memref<256x256xbf16, #tpu.memory_space<vmem>>, %arg3: memref<256x128xbf16, #tpu.memory_space<vmem>>, %arg4: memref<256x128xbf16, #tpu.memory_space<vmem>>, %arg5: memref<256x128xbf16, #tpu.memory_space<vmem>>, %arg6: memref<1x128xf32, #tpu.memory_space<vmem>>, %arg7: memref<256x128xbf16, #tpu.memory_space<vmem>>, %arg8: memref<256x128xf32, #tpu.memory_space<vmem>>) attributes {dimension_semantics = [#tpu.dimension_semantics<parallel>, #tpu.dimension_semantics<arbitrary>], iteration_bounds = array<i64: 1, 1>, scalar_prefetch = 0 : i64, scratch_operands = 1 : i64, tpu.core_type = #tpu.core_type<tc>, window_params = [{transform_indices = @transform_0, window_bounds = array<i64: 256, 256>}, {transform_indices = @transform_1, window_bounds = array<i64: 256, 128>}, {transform_indices = @transform_2, window_bounds = array<i64: 256, 128>}, {pipeline_mode = #tpu.pipeline_mode<synchronous>, transform_indices = @transform_3, window_bounds = array<i64: 256, 128>}, {pipeline_mode = #tpu.pipeline_mode<synchronous>, transform_indices = @transform_4, window_bounds = array<i64: 1, 128>}, {transform_indices = @transform_5, window_bounds = array<i64: 256, 128>}]} {
    %c0_i32 = arith.constant 0 : i32
    %0 = arith.cmpi eq, %arg1, %c0_i32 : i32
    %1 = arith.extui %0 : i1 to i32
    %c0_i32_0 = arith.constant 0 : i32
    %2 = arith.cmpi ne, %1, %c0_i32_0 : i32
    scf.if %2 {
      %cst_10 = arith.constant 0.000000e+00 : f32
      %12 = vector.broadcast %cst_10 : f32 to vector<256x128xf32>
      %c0_11 = arith.constant 0 : index
      %c0_12 = arith.constant 0 : index
      %13 = vector.load %arg8[%c0_11, %c0_12] : memref<256x128xf32, #tpu.memory_space<vmem>>, vector<256x128xf32>
      tpu.vector_store %arg8[%c0_11, %c0_12], %12 {strides = array<i32>} : memref<256x128xf32, #tpu.memory_space<vmem>>, vector<256x128xf32>,
    } else {
    }
    %c0 = arith.constant 0 : index
    %c0_1 = arith.constant 0 : index
    %3 = vector.load %arg8[%c0, %c0_1] : memref<256x128xf32, #tpu.memory_space<vmem>>, vector<256x128xf32>
    %c0_2 = arith.constant 0 : index
    %c0_3 = arith.constant 0 : index
    %4 = vector.load %arg2[%c0_2, %c0_3] : memref<256x256xbf16, #tpu.memory_space<vmem>>, vector<256x256xbf16>
    %c0_4 = arith.constant 0 : index
    %c0_5 = arith.constant 0 : index
    %5 = vector.load %arg3[%c0_4, %c0_5] : memref<256x128xbf16, #tpu.memory_space<vmem>>, vector<256x128xbf16>
    %cst = arith.constant dense<0.000000e+00> : vector<256x128xf32>
    %6 = tpu.matmul %4, %5, %cst {dimension_numbers = #tpu.dot_dimension_numbers<[1], [0], [0], [1], [0, 0, 1, 1], [], []>} : vector<256x256xbf16>, vector<256x128xbf16>, vector<256x128xf32> -> vector<256x128xf32>
    %7 = arith.addf %3, %6 : vector<256x128xf32>
    %c0_6 = arith.constant 0 : index
    %c0_7 = arith.constant 0 : index
    %8 = vector.load %arg8[%c0_6, %c0_7] : memref<256x128xf32, #tpu.memory_space<vmem>>, vector<256x128xf32>
    tpu.vector_store %arg8[%c0_6, %c0_7], %7 {strides = array<i32>} : memref<256x128xf32, #tpu.memory_space<vmem>>, vector<256x128xf32>,
    %c0_i32_8 = arith.constant 0 : i32
    %9 = arith.cmpi eq, %arg1, %c0_i32_8 : i32
    %10 = arith.extui %9 : i1 to i32
    %c0_i32_9 = arith.constant 0 : i32
    %11 = arith.cmpi ne, %10, %c0_i32_9 : i32
    scf.if %11 {
      %c0_10 = arith.constant 0 : index
      %c0_11 = arith.constant 0 : index
      %12 = vector.load %arg4[%c0_10, %c0_11] : memref<256x128xbf16, #tpu.memory_space<vmem>>, vector<256x128xbf16>
      %c0_12 = arith.constant 0 : index
      %c0_13 = arith.constant 0 : index
      %13 = vector.load %arg8[%c0_12, %c0_13] : memref<256x128xf32, #tpu.memory_space<vmem>>, vector<256x128xf32>
      %14 = arith.truncf %13 : vector<256x128xf32> to vector<256x128xbf16>
      %15 = tpu.concatenate %12, %14 in 1 : vector<256x128xbf16>, vector<256x128xbf16> -> vector<256x256xbf16>
      %c0_14 = arith.constant 0 : index
      %c0_15 = arith.constant 0 : index
      %16 = vector.load %arg5[%c0_14, %c0_15] : memref<256x128xbf16, #tpu.memory_space<vmem>>, vector<256x128xbf16>
      %cst_16 = arith.constant dense<0.000000e+00> : vector<256x128xf32>
      %17 = tpu.matmul %15, %16, %cst_16 {dimension_numbers = #tpu.dot_dimension_numbers<[1], [0], [0], [1], [0, 0, 1, 1], [], []>} : vector<256x256xbf16>, vector<256x128xbf16>, vector<256x128xf32> -> vector<256x128xf32>
      %c0_17 = arith.constant 0 : index
      %c0_18 = arith.constant 0 : index
      %18 = vector.load %arg6[%c0_17, %c0_18] : memref<1x128xf32, #tpu.memory_space<vmem>>, vector<1x128xf32>
      %19 = vector.broadcast %18 : vector<1x128xf32> to vector<256x128xf32>
      %20 = arith.addf %17, %19 : vector<256x128xf32>
      %cst_19 = arith.constant 0.000000e+00 : f32
      %21 = vector.broadcast %cst_19 : f32 to vector<256x128xf32>
      %22 = arith.maximumf %20, %21 : vector<256x128xf32>
      %23 = arith.truncf %22 : vector<256x128xf32> to vector<256x128xbf16>
      %c0_20 = arith.constant 0 : index
      %c0_21 = arith.constant 0 : index
      %24 = vector.load %arg7[%c0_20, %c0_21] : memref<256x128xbf16, #tpu.memory_space<vmem>>, vector<256x128xbf16>
      tpu.vector_store %arg7[%c0_20, %c0_21], %23 {strides = array<i32>} : memref<256x128xbf16, #tpu.memory_space<vmem>>, vector<256x128xbf16>,
    } else {
    }
    return
  }
  func.func @transform_0(%arg0: i32, %arg1: i32) -> (i32, i32) {
    %c0_i32 = arith.constant 0 : i32
    return %arg0, %arg1 : i32, i32
  }
  func.func @transform_1(%arg0: i32, %arg1: i32) -> (i32, i32) {
    %c0_i32 = arith.constant 0 : i32
    %c0_i32_0 = arith.constant 0 : i32
    return %arg1, %c0_i32 : i32, i32
  }
  func.func @transform_2(%arg0: i32, %arg1: i32) -> (i32, i32) {
    %c0_i32 = arith.constant 0 : i32
    %c0_i32_0 = arith.constant 0 : i32
    return %arg0, %c0_i32 : i32, i32
  }
  func.func @transform_3(%arg0: i32, %arg1: i32) -> (i32, i32) {
    %c0_i32 = arith.constant 0 : i32
    %c0_i32_0 = arith.constant 0 : i32
    %c0_i32_1 = arith.constant 0 : i32
    return %c0_i32, %c0_i32_0 : i32, i32
  }
  func.func @transform_4(%arg0: i32, %arg1: i32) -> (i32, i32) {
    %c0_i32 = arith.constant 0 : i32
    %c0_i32_0 = arith.constant 0 : i32
    %c0_i32_1 = arith.constant 0 : i32
    return %c0_i32, %c0_i32_0 : i32, i32
  }
  func.func @transform_5(%arg0: i32, %arg1: i32) -> (i32, i32) {
    %c0_i32 = arith.constant 0 : i32
    %c0_i32_0 = arith.constant 0 : i32
    return %arg0, %c0_i32 : i32, i32
  }
}

module attributes {stable_mosaic.version = 11 : i64} {
  func.func @cheb_conv_kernel(%arg0: i32, %arg1: i32, %arg2: memref<256x256xbf16, #tpu.memory_space<vmem>>, %arg3: memref<256x128xbf16, #tpu.memory_space<vmem>>, %arg4: memref<256x128xbf16, #tpu.memory_space<vmem>>, %arg5: memref<256x128xbf16, #tpu.memory_space<vmem>>, %arg6: memref<1x128xf32, #tpu.memory_space<vmem>>, %arg7: memref<256x128xf32, #tpu.memory_space<vmem>>, %arg8: memref<256x128xf32, #tpu.memory_space<vmem>>) attributes {dimension_semantics = [#tpu.dimension_semantics<parallel>, #tpu.dimension_semantics<arbitrary>], iteration_bounds = array<i64: 1, 1>, scalar_prefetch = 0 : i64, scratch_operands = 1 : i64, tpu.core_type = #tpu.core_type<tc>, window_params = [{transform_indices = @transform_0, window_bounds = array<i64: 256, 256>}, {transform_indices = @transform_1, window_bounds = array<i64: 256, 128>}, {transform_indices = @transform_2, window_bounds = array<i64: 256, 128>}, {pipeline_mode = #tpu.pipeline_mode<synchronous>, transform_indices = @transform_3, window_bounds = array<i64: 256, 128>}, {pipeline_mode = #tpu.pipeline_mode<synchronous>, transform_indices = @transform_4, window_bounds = array<i64: 1, 128>}, {transform_indices = @transform_5, window_bounds = array<i64: 256, 128>}]} {
    %c0_i32 = arith.constant 0 : i32
    %0 = arith.cmpi eq, %arg1, %c0_i32 : i32
    %1 = arith.extui %0 : i1 to i32
    %c0_i32_0 = arith.constant 0 : i32
    %2 = arith.cmpi ne, %1, %c0_i32_0 : i32
    scf.if %2 {
      %cst_10 = arith.constant 0.000000e+00 : f32
      %12 = vector.broadcast %cst_10 : f32 to vector<256x128xf32>
      %c0_11 = arith.constant 0 : index
      %c0_12 = arith.constant 0 : index
      %13 = vector.load %arg8[%c0_11, %c0_12] : memref<256x128xf32, #tpu.memory_space<vmem>>, vector<256x128xf32>
      tpu.vector_store %arg8[%c0_11, %c0_12], %12 {strides = array<i32>} : memref<256x128xf32, #tpu.memory_space<vmem>>, vector<256x128xf32>,
    } else {
    }
    %c0 = arith.constant 0 : index
    %c0_1 = arith.constant 0 : index
    %3 = vector.load %arg8[%c0, %c0_1] : memref<256x128xf32, #tpu.memory_space<vmem>>, vector<256x128xf32>
    %c0_2 = arith.constant 0 : index
    %c0_3 = arith.constant 0 : index
    %4 = vector.load %arg2[%c0_2, %c0_3] : memref<256x256xbf16, #tpu.memory_space<vmem>>, vector<256x256xbf16>
    %c0_4 = arith.constant 0 : index
    %c0_5 = arith.constant 0 : index
    %5 = vector.load %arg3[%c0_4, %c0_5] : memref<256x128xbf16, #tpu.memory_space<vmem>>, vector<256x128xbf16>
    %cst = arith.constant dense<0.000000e+00> : vector<256x128xf32>
    %6 = tpu.matmul %4, %5, %cst {dimension_numbers = #tpu.dot_dimension_numbers<[1], [0], [0], [1], [0, 0, 1, 1], [], []>} : vector<256x256xbf16>, vector<256x128xbf16>, vector<256x128xf32> -> vector<256x128xf32>
    %7 = arith.addf %3, %6 : vector<256x128xf32>
    %c0_6 = arith.constant 0 : index
    %c0_7 = arith.constant 0 : index
    %8 = vector.load %arg8[%c0_6, %c0_7] : memref<256x128xf32, #tpu.memory_space<vmem>>, vector<256x128xf32>
    tpu.vector_store %arg8[%c0_6, %c0_7], %7 {strides = array<i32>} : memref<256x128xf32, #tpu.memory_space<vmem>>, vector<256x128xf32>,
    %c0_i32_8 = arith.constant 0 : i32
    %9 = arith.cmpi eq, %arg1, %c0_i32_8 : i32
    %10 = arith.extui %9 : i1 to i32
    %c0_i32_9 = arith.constant 0 : i32
    %11 = arith.cmpi ne, %10, %c0_i32_9 : i32
    scf.if %11 {
      %c0_10 = arith.constant 0 : index
      %c0_11 = arith.constant 0 : index
      %12 = vector.load %arg4[%c0_10, %c0_11] : memref<256x128xbf16, #tpu.memory_space<vmem>>, vector<256x128xbf16>
      %c0_12 = arith.constant 0 : index
      %c0_13 = arith.constant 0 : index
      %13 = vector.load %arg8[%c0_12, %c0_13] : memref<256x128xf32, #tpu.memory_space<vmem>>, vector<256x128xf32>
      %14 = arith.truncf %13 : vector<256x128xf32> to vector<256x128xbf16>
      %15 = tpu.concatenate %12, %14 in 1 : vector<256x128xbf16>, vector<256x128xbf16> -> vector<256x256xbf16>
      %c0_14 = arith.constant 0 : index
      %c0_15 = arith.constant 0 : index
      %16 = vector.load %arg5[%c0_14, %c0_15] : memref<256x128xbf16, #tpu.memory_space<vmem>>, vector<256x128xbf16>
      %cst_16 = arith.constant dense<0.000000e+00> : vector<256x128xf32>
      %17 = tpu.matmul %15, %16, %cst_16 {dimension_numbers = #tpu.dot_dimension_numbers<[1], [0], [0], [1], [0, 0, 1, 1], [], []>} : vector<256x256xbf16>, vector<256x128xbf16>, vector<256x128xf32> -> vector<256x128xf32>
      %c0_17 = arith.constant 0 : index
      %c0_18 = arith.constant 0 : index
      %18 = vector.load %arg6[%c0_17, %c0_18] : memref<1x128xf32, #tpu.memory_space<vmem>>, vector<1x128xf32>
      %19 = vector.broadcast %18 : vector<1x128xf32> to vector<256x128xf32>
      %20 = arith.addf %17, %19 : vector<256x128xf32>
      %c0_19 = arith.constant 0 : index
      %c0_20 = arith.constant 0 : index
      %21 = vector.load %arg7[%c0_19, %c0_20] : memref<256x128xf32, #tpu.memory_space<vmem>>, vector<256x128xf32>
      tpu.vector_store %arg7[%c0_19, %c0_20], %20 {strides = array<i32>} : memref<256x128xf32, #tpu.memory_space<vmem>>, vector<256x128xf32>,
    } else {
    }
    return
  }
  func.func @transform_0(%arg0: i32, %arg1: i32) -> (i32, i32) {
    %c0_i32 = arith.constant 0 : i32
    return %arg0, %arg1 : i32, i32
  }
  func.func @transform_1(%arg0: i32, %arg1: i32) -> (i32, i32) {
    %c0_i32 = arith.constant 0 : i32
    %c0_i32_0 = arith.constant 0 : i32
    return %arg1, %c0_i32 : i32, i32
  }
  func.func @transform_2(%arg0: i32, %arg1: i32) -> (i32, i32) {
    %c0_i32 = arith.constant 0 : i32
    %c0_i32_0 = arith.constant 0 : i32
    return %arg0, %c0_i32 : i32, i32
  }
  func.func @transform_3(%arg0: i32, %arg1: i32) -> (i32, i32) {
    %c0_i32 = arith.constant 0 : i32
    %c0_i32_0 = arith.constant 0 : i32
    %c0_i32_1 = arith.constant 0 : i32
    return %c0_i32, %c0_i32_0 : i32, i32
  }
  func.func @transform_4(%arg0: i32, %arg1: i32) -> (i32, i32) {
    %c0_i32 = arith.constant 0 : i32
    %c0_i32_0 = arith.constant 0 : i32
    %c0_i32_1 = arith.constant 0 : i32
    return %c0_i32, %c0_i32_0 : i32, i32
  }
  func.func @transform_5(%arg0: i32, %arg1: i32) -> (i32, i32) {
    %c0_i32 = arith.constant 0 : i32
    %c0_i32_0 = arith.constant 0 : i32
    return %arg0, %c0_i32 : i32, i32
  }
}

</mosaic_0001>

<llo_original>
// kernel: cheb_gcn2_forward.3
$region0: #{cheb_gcn2_forward.3}
  #allocation0 [shape = 'u32[]', space=smem, size = 0x4, offset = 0x4, fixed_abs, tag = 'smem constant byte address 0x4 - core index']
  #allocation1 [shape = 'u32[144,128]{1,0:T(1,128)}', space=vmem, size = 0x12000, scoped, tag = 'internal scratch']
  #allocation2 [shape = 'f32[256,128]{1,0:T(8,128)}', space=vmem, size = 0x20000, scoped, tag = 'scratch operand']
  %s0 = inlined_call_operand.vmem [shape: bf16[256,256], index: 0, kind: input, shape index: {}]
  %s1 = inlined_call_operand.vmem [shape: bf16[256,128], index: 1, kind: input, shape index: {}, may-alias: {1,2}]
  %s2 = inlined_call_operand.vmem [shape: bf16[256,128], index: 2, kind: input, shape index: {}, may-alias: {1,2}]
  %s3 = inlined_call_operand.vmem [shape: bf16[256,128], index: 3, kind: input, shape index: {}]
  %s4 = inlined_call_operand.vmem [shape: f32[1,128], index: 4, kind: input, shape index: {}]
  %s5 = inlined_call_operand.vmem [shape: f32[256,128], index: 5, kind: output, shape index: {}]
  %s6 = sld [smem:[#allocation0]]
  $region38: #{cheb_gcn2_forward.3} parent=0
    _
  %s8 = ssub.s32 1, %s6
  %s9 = scalar_select 0, %s8, %s6
  // Predicated region
  $region2: #{cheb_gcn2_forward.3} parent=0 // pred_check
    _
  $region3: #{cheb_gcn2_forward.3} parent=0 // pred_check_branch
    %11 = sbr.rel (0) target = $region5
  $region4: #{cheb_gcn2_forward.3} parent=0 // pred_region
    _
  $region5: #{cheb_gcn2_forward.3} parent=0 // pred_fallthru
    _
  // Predicated region
  $region6: #{cheb_gcn2_forward.3} parent=0 // pred_check
    _
  $region7: #{cheb_gcn2_forward.3} parent=0 // pred_check_branch
    %13 = sbr.rel (0) target = $region9
  $region8: #{cheb_gcn2_forward.3} parent=0 // pred_region
    _
  $region9: #{cheb_gcn2_forward.3} parent=0 // pred_fallthru
    _
  // Predicated region
  $region10: #{cheb_gcn2_forward.3} parent=0 // pred_check
    _
  $region11: #{cheb_gcn2_forward.3} parent=0 // pred_check_branch
    %15 = sbr.rel (0) target = $region13
  $region12: #{cheb_gcn2_forward.3} parent=0 // pred_region
    _
  $region13: #{cheb_gcn2_forward.3} parent=0 // pred_fallthru
    _
  // Predicated region
  $region14: #{cheb_gcn2_forward.3} parent=0 // pred_check
    _
  $region15: #{cheb_gcn2_forward.3} parent=0 // pred_check_branch
    %17 = sbr.rel (0) target = $region17
  $region16: #{cheb_gcn2_forward.3} parent=0 // pred_region
    _
  $region17: #{cheb_gcn2_forward.3} parent=0 // pred_fallthru
    _
  // Predicated region
  $region18: #{cheb_gcn2_forward.3} parent=0 // pred_check
    _
  $region19: #{cheb_gcn2_forward.3} parent=0 // pred_check_branch
    %19 = sbr.rel (0) target = $region21
  $region20: #{cheb_gcn2_forward.3} parent=0 // pred_region
    _
  $region21: #{cheb_gcn2_forward.3} parent=0 // pred_fallthru
    _
  %p21 = scmp.eq.s32.totalorder 0, 0
  // Predicated region
  $region22: #{cheb_gcn2_forward.3} parent=0 // pred_check
    %p22 = pneg %p21
  $region23: #{cheb_gcn2_forward.3} parent=0 // pred_check_branch
    %24 = sbr.rel (%p22) target = $region25
  $region24: #{cheb_gcn2_forward.3} parent=0 // pred_region
    %25 = vst [vmem:[#allocation2] sm:$0xff] 0.0
    %26 = vst [vmem:[#allocation2 + $0x8] sm:$0xff] 0.0
    %27 = vst [vmem:[#allocation2 + $0x10] sm:$0xff] 0.0
    %28 = vst [vmem:[#allocation2 + $0x18] sm:$0xff] 0.0
    %29 = vst [vmem:[#allocation2 + $0x20] sm:$0xff] 0.0
    %30 = vst [vmem:[#allocation2 + $0x28] sm:$0xff] 0.0
    %31 = vst [vmem:[#allocation2 + $0x30] sm:$0xff] 0.0
    %32 = vst [vmem:[#allocation2 + $0x38] sm:$0xff] 0.0
    %33 = vst [vmem:[#allocation2 + $0x40] sm:$0xff] 0.0
    %34 = vst [vmem:[#allocation2 + $0x48] sm:$0xff] 0.0
    %35 = vst [vmem:[#allocation2 + $0x50] sm:$0xff] 0.0
    %36 = vst [vmem:[#allocation2 + $0x58] sm:$0xff] 0.0
    %37 = vst [vmem:[#allocation2 + $0x60] sm:$0xff] 0.0
    %38 = vst [vmem:[#allocation2 + $0x68] sm:$0xff] 0.0
    %39 = vst [vmem:[#allocation2 + $0x70] sm:$0xff] 0.0
    %40 = vst [vmem:[#allocation2 + $0x78] sm:$0xff] 0.0
    %41 = vst [vmem:[#allocation2 + $0x80] sm:$0xff] 0.0
    %42 = vst [vmem:[#allocation2 + $0x88] sm:$0xff] 0.0
    %43 = vst [vmem:[#allocation2 + $0x90] sm:$0xff] 0.0
    %44 = vst [vmem:[#allocation2 + $0x98] sm:$0xff] 0.0
    %45 = vst [vmem:[#allocation2 + $0xa0] sm:$0xff] 0.0
    %46 = vst [vmem:[#allocation2 + $0xa8] sm:$0xff] 0.0
    %47 = vst [vmem:[#allocation2 + $0xb0] sm:$0xff] 0.0
    %48 = vst [vmem:[#allocation2 + $0xb8] sm:$0xff] 0.0
    %49 = vst [vmem:[#allocation2 + $0xc0] sm:$0xff] 0.0
    %50 = vst [vmem:[#allocation2 + $0xc8] sm:$0xff] 0.0
    %51 = vst [vmem:[#allocation2 + $0xd0] sm:$0xff] 0.0
    %52 = vst [vmem:[#allocation2 + $0xd8] sm:$0xff] 0.0
    %53 = vst [vmem:[#allocation2 + $0xe0] sm:$0xff] 0.0
    %54 = vst [vmem:[#allocation2 + $0xe8] sm:$0xff] 0.0
    %55 = vst [vmem:[#allocation2 + $0xf0] sm:$0xff] 0.0
    %56 = vst [vmem:[#allocation2 + $0xf8] sm:$0xff] 0.0
  $region25: #{cheb_gcn2_forward.3} parent=0 // pred_fallthru
    _
  %v57 = vld [vmem:[#allocation2] sm:$0xff]
  %v58 = vld [vmem:[#allocation2 + $0x8] sm:$0xff]
  %v59 = vld [vmem:[#allocation2 + $0x10] sm:$0xff]
  %v60 = vld [vmem:[#allocation2 + $0x18] sm:$0xff]
  %v61 = vld [vmem:[#allocation2 + $0x20] sm:$0xff]
  %v62 = vld [vmem:[#allocation2 + $0x28] sm:$0xff]
  %v63 = vld [vmem:[#allocation2 + $0x30] sm:$0xff]
  %v64 = vld [vmem:[#allocation2 + $0x38] sm:$0xff]
  %v65 = vld [vmem:[#allocation2 + $0x40] sm:$0xff]
  %v66 = vld [vmem:[#allocation2 + $0x48] sm:$0xff]
  %v67 = vld [vmem:[#allocation2 + $0x50] sm:$0xff]
  %v68 = vld [vmem:[#allocation2 + $0x58] sm:$0xff]
  %v69 = vld [vmem:[#allocation2 + $0x60] sm:$0xff]
  %v70 = vld [vmem:[#allocation2 + $0x68] sm:$0xff]
  %v71 = vld [vmem:[#allocation2 + $0x70] sm:$0xff]
  %v72 = vld [vmem:[#allocation2 + $0x78] sm:$0xff]
  %v73 = vld [vmem:[#allocation2 + $0x80] sm:$0xff]
  %v74 = vld [vmem:[#allocation2 + $0x88] sm:$0xff]
  %v75 = vld [vmem:[#allocation2 + $0x90] sm:$0xff]
  %v76 = vld [vmem:[#allocation2 + $0x98] sm:$0xff]
  %v77 = vld [vmem:[#allocation2 + $0xa0] sm:$0xff]
  %v78 = vld [vmem:[#allocation2 + $0xa8] sm:$0xff]
  %v79 = vld [vmem:[#allocation2 + $0xb0] sm:$0xff]
  %v80 = vld [vmem:[#allocation2 + $0xb8] sm:$0xff]
  %v81 = vld [vmem:[#allocation2 + $0xc0] sm:$0xff]
  %v82 = vld [vmem:[#allocation2 + $0xc8] sm:$0xff]
  %v83 = vld [vmem:[#allocation2 + $0xd0] sm:$0xff]
  %v84 = vld [vmem:[#allocation2 + $0xd8] sm:$0xff]
  %v85 = vld [vmem:[#allocation2 + $0xe0] sm:$0xff]
  %v86 = vld [vmem:[#allocation2 + $0xe8] sm:$0xff]
  %v87 = vld [vmem:[#allocation2 + $0xf0] sm:$0xff]
  %v88 = vld [vmem:[#allocation2 + $0xf8] sm:$0xff]
  %v89 = vld [vmem:[%s0] sm:$0xff]
  %v90 = vld [vmem:[%s0 + $0x8] sm:$0xff]
  %v91 = vld [vmem:[%s0 + $0x10] sm:$0xff]
  %v92 = vld [vmem:[%s0 + $0x18] sm:$0xff]
  %v93 = vld [vmem:[%s0 + $0x20] sm:$0xff]
  %v94 = vld [vmem:[%s0 + $0x28] sm:$0xff]
  %v95 = vld [vmem:[%s0 + $0x30] sm:$0xff]
  %v96 = vld [vmem:[%s0 + $0x38] sm:$0xff]
  %v97 = vld [vmem:[%s0 + $0x40] sm:$0xff]
  %v98 = vld [vmem:[%s0 + $0x48] sm:$0xff]
  %v99 = vld [vmem:[%s0 + $0x50] sm:$0xff]
  %v100 = vld [vmem:[%s0 + $0x58] sm:$0xff]
  %v101 = vld [vmem:[%s0 + $0x60] sm:$0xff]
  %v102 = vld [vmem:[%s0 + $0x68] sm:$0xff]
  %v103 = vld [vmem:[%s0 + $0x70] sm:$0xff]
  %v104 = vld [vmem:[%s0 + $0x78] sm:$0xff]
  %v105 = vld [vmem:[%s0 + $0x80] sm:$0xff]
  %v106 = vld [vmem:[%s0 + $0x88] sm:$0xff]
  %v107 = vld [vmem:[%s0 + $0x90] sm:$0xff]
  %v108 = vld [vmem:[%s0 + $0x98] sm:$0xff]
  %v109 = vld [vmem:[%s0 + $0xa0] sm:$0xff]
  %v110 = vld [vmem:[%s0 + $0xa8] sm:$0xff]
  %v111 = vld [vmem:[%s0 + $0xb0] sm:$0xff]
  %v112 = vld [vmem:[%s0 + $0xb8] sm:$0xff]
  %v113 = vld [vmem:[%s0 + $0xc0] sm:$0xff]
  %v114 = vld [vmem:[%s0 + $0xc8] sm:$0xff]
  %v115 = vld [vmem:[%s0 + $0xd0] sm:$0xff]
  %v116 = vld [vmem:[%s0 + $0xd8] sm:$0xff]
  %v117 = vld [vmem:[%s0 + $0xe0] sm:$0xff]
  %v118 = vld [vmem:[%s0 + $0xe8] sm:$0xff]
  %v119 = vld [vmem:[%s0 + $0xf0] sm:$0xff]
  %v120 = vld [vmem:[%s0 + $0xf8] sm:$0xff]
  %v121 = vld [vmem:[%s1] sm:$0xf]
  %v122 = vld [vmem:[%s1 + $0x4] sm:$0xf]
  %v123 = vld [vmem:[%s1 + $0x8] sm:$0xf]
  %v124 = vld [vmem:[%s1 + $0xc] sm:$0xf]
  %v125 = vld [vmem:[%s1 + $0x10] sm:$0xf]
  %v126 = vld [vmem:[%s1 + $0x14] sm:$0xf]
  %v127 = vld [vmem:[%s1 + $0x18] sm:$0xf]
  %v128 = vld [vmem:[%s1 + $0x1c] sm:$0xf]
  %v129 = vld [vmem:[%s1 + $0x20] sm:$0xf]
  %v130 = vld [vmem:[%s1 + $0x24] sm:$0xf]
  %v131 = vld [vmem:[%s1 + $0x28] sm:$0xf]
  %v132 = vld [vmem:[%s1 + $0x2c] sm:$0xf]
  %v133 = vld [vmem:[%s1 + $0x30] sm:$0xf]
  %v134 = vld [vmem:[%s1 + $0x34] sm:$0xf]
  %v135 = vld [vmem:[%s1 + $0x38] sm:$0xf]
  %v136 = vld [vmem:[%s1 + $0x3c] sm:$0xf]
  %v137 = vld [vmem:[%s1 + $0x40] sm:$0xf]
  %v138 = vld [vmem:[%s1 + $0x44] sm:$0xf]
  %v139 = vld [vmem:[%s1 + $0x48] sm:$0xf]
  %v140 = vld [vmem:[%s1 + $0x4c] sm:$0xf]
  %v141 = vld [vmem:[%s1 + $0x50] sm:$0xf]
  %v142 = vld [vmem:[%s1 + $0x54] sm:$0xf]
  %v143 = vld [vmem:[%s1 + $0x58] sm:$0xf]
  %v144 = vld [vmem:[%s1 + $0x5c] sm:$0xf]
  %v145 = vld [vmem:[%s1 + $0x60] sm:$0xf]
  %v146 = vld [vmem:[%s1 + $0x64] sm:$0xf]
  %v147 = vld [vmem:[%s1 + $0x68] sm:$0xf]
  %v148 = vld [vmem:[%s1 + $0x6c] sm:$0xf]
  %v149 = vld [vmem:[%s1 + $0x70] sm:$0xf]
  %v150 = vld [vmem:[%s1 + $0x74] sm:$0xf]
  %v151 = vld [vmem:[%s1 + $0x78] sm:$0xf]
  %v152 = vld [vmem:[%s1 + $0x7c] sm:$0xf]
  %v185 = vunpack.c.l.b16 %v89
  %v186 = vunpack.c.h.b16 %v89
  %v187 = vunpack.c.l.b16 %v90
  %v188 = vunpack.c.h.b16 %v90
  %v189 = vunpack.c.l.b16 %v91
  %v190 = vunpack.c.h.b16 %v91
  %v191 = vunpack.c.l.b16 %v92
  %v192 = vunpack.c.h.b16 %v92
  %v193 = vunpack.c.l.b16 %v93
  %v194 = vunpack.c.h.b16 %v93
  %v195 = vunpack.c.l.b16 %v94
  %v196 = vunpack.c.h.b16 %v94
  %v197 = vunpack.c.l.b16 %v95
  %v198 = vunpack.c.h.b16 %v95
  %v199 = vunpack.c.l.b16 %v96
  %v200 = vunpack.c.h.b16 %v96
  %v201 = vunpack.c.l.b16 %v97
  %v202 = vunpack.c.h.b16 %v97
  %v203 = vunpack.c.l.b16 %v98
  %v204 = vunpack.c.h.b16 %v98
  %v205 = vunpack.c.l.b16 %v99
  %v206 = vunpack.c.h.b16 %v99
  %v207 = vunpack.c.l.b16 %v100
  %v208 = vunpack.c.h.b16 %v100
  %v209 = vunpack.c.l.b16 %v101
  %v210 = vunpack.c.h.b16 %v101
  %v211 = vunpack.c.l.b16 %v102
  %v212 = vunpack.c.h.b16 %v102
  %v213 = vunpack.c.l.b16 %v103
  %v214 = vunpack.c.h.b16 %v103
  %v215 = vunpack.c.l.b16 %v104
  %v216 = vunpack.c.h.b16 %v104
  %v217 = vunpack.c.l.b16 %v105
  %v218 = vunpack.c.h.b16 %v105
  %v219 = vunpack.c.l.b16 %v106
  %v220 = vunpack.c.h.b16 %v106
  %v221 = vunpack.c.l.b16 %v107
  %v222 = vunpack.c.h.b16 %v107
  %v223 = vunpack.c.l.b16 %v108
  %v224 = vunpack.c.h.b16 %v108
  %v225 = vunpack.c.l.b16 %v109
  %v226 = vunpack.c.h.b16 %v109
  %v227 = vunpack.c.l.b16 %v110
  %v228 = vunpack.c.h.b16 %v110
  %v229 = vunpack.c.l.b16 %v111
  %v230 = vunpack.c.h.b16 %v111
  %v231 = vunpack.c.l.b16 %v112
  %v232 = vunpack.c.h.b16 %v112
  %v233 = vunpack.c.l.b16 %v113
  %v234 = vunpack.c.h.b16 %v113
  %v235 = vunpack.c.l.b16 %v114
  %v236 = vunpack.c.h.b16 %v114
  %v237 = vunpack.c.l.b16 %v115
  %v238 = vunpack.c.h.b16 %v115
  %v239 = vunpack.c.l.b16 %v116
  %v240 = vunpack.c.h.b16 %v116
  %v241 = vunpack.c.l.b16 %v117
  %v242 = vunpack.c.h.b16 %v117
  %v243 = vunpack.c.l.b16 %v118
  %v244 = vunpack.c.h.b16 %v118
  %v245 = vunpack.c.l.b16 %v119
  %v246 = vunpack.c.h.b16 %v119
  %v247 = vunpack.c.l.b16 %v120
  %v248 = vunpack.c.h.b16 %v120
  %v249 = vpack.c.b16 %v187, %v185
  %v250 = vpack.c.b16 %v188, %v186
  %v251 = vpack.c.b16 %v191, %v189
  %v252 = vpack.c.b16 %v192, %v190
  %v253 = vpack.c.b16 %v195, %v193
  %v254 = vpack.c.b16 %v196, %v194
  %v255 = vpack.c.b16 %v199, %v197
  %v256 = vpack.c.b16 %v200, %v198
  %v257 = vpack.c.b16 %v203, %v201
  %v258 = vpack.c.b16 %v204, %v202
  %v259 = vpack.c.b16 %v207, %v205
  %v260 = vpack.c.b16 %v208, %v206
  %v261 = vpack.c.b16 %v211, %v209
  %v262 = vpack.c.b16 %v212, %v210
  %v263 = vpack.c.b16 %v215, %v213
  %v264 = vpack.c.b16 %v216, %v214
  %v265 = vpack.c.b16 %v219, %v217
  %v266 = vpack.c.b16 %v220, %v218
  %v267 = vpack.c.b16 %v223, %v221
  %v268 = vpack.c.b16 %v224, %v222
  %v269 = vpack.c.b16 %v227, %v225
  %v270 = vpack.c.b16 %v228, %v226
  %v271 = vpack.c.b16 %v231, %v229
  %v272 = vpack.c.b16 %v232, %v230
  %v273 = vpack.c.b16 %v235, %v233
  %v274 = vpack.c.b16 %v236, %v234
  %v275 = vpack.c.b16 %v239, %v237
  %v276 = vpack.c.b16 %v240, %v238
  %v277 = vpack.c.b16 %v243, %v241
  %v278 = vpack.c.b16 %v244, %v242
  %v279 = vpack.c.b16 %v247, %v245
  %v280 = vpack.c.b16 %v248, %v246
  %v345 = vunpack.c.l.b16 %v121
  %v346 = vunpack.c.l.b16 %v122
  %v347 = vunpack.c.l.b16 %v123
  %v348 = vunpack.c.l.b16 %v124
  %v349 = vunpack.c.l.b16 %v125
  %v350 = vunpack.c.l.b16 %v126
  %v351 = vunpack.c.l.b16 %v127
  %v352 = vunpack.c.l.b16 %v128
  %v353 = vunpack.c.l.b16 %v129
  %v354 = vunpack.c.l.b16 %v130
  %v355 = vunpack.c.l.b16 %v131
  %v356 = vunpack.c.l.b16 %v132
  %v357 = vunpack.c.l.b16 %v133
  %v358 = vunpack.c.l.b16 %v134
  %v359 = vunpack.c.l.b16 %v135
  %v360 = vunpack.c.l.b16 %v136
  %v361 = vunpack.c.l.b16 %v137
  %v362 = vunpack.c.l.b16 %v138
  %v363 = vunpack.c.l.b16 %v139
  %v364 = vunpack.c.l.b16 %v140
  %v365 = vunpack.c.l.b16 %v141
  %v366 = vunpack.c.l.b16 %v142
  %v367 = vunpack.c.l.b16 %v143
  %v368 = vunpack.c.l.b16 %v144
  %v369 = vunpack.c.l.b16 %v145
  %v370 = vunpack.c.l.b16 %v146
  %v371 = vunpack.c.l.b16 %v147
  %v372 = vunpack.c.l.b16 %v148
  %v373 = vunpack.c.l.b16 %v149
  %v374 = vunpack.c.l.b16 %v150
  %v375 = vunpack.c.l.b16 %v151
  %v376 = vunpack.c.l.b16 %v152
  %v377 = vpack.c.b16 %v346, %v345
  %v378 = vpack.c.b16 %v348, %v347
  %v379 = vpack.c.b16 %v350, %v349
  %v380 = vpack.c.b16 %v352, %v351
  %v381 = vpack.c.b16 %v354, %v353
  %v382 = vpack.c.b16 %v356, %v355
  %v383 = vpack.c.b16 %v358, %v357
  %v384 = vpack.c.b16 %v360, %v359
  %v385 = vpack.c.b16 %v362, %v361
  %v386 = vpack.c.b16 %v364, %v363
  %v387 = vpack.c.b16 %v366, %v365
  %v388 = vpack.c.b16 %v368, %v367
  %v389 = vpack.c.b16 %v370, %v369
  %v390 = vpack.c.b16 %v372, %v371
  %v391 = vpack.c.b16 %v374, %v373
  %v392 = vpack.c.b16 %v376, %v375
  %409 = vmatprep.subr.bf16.mxu0 0
  %410 = vmatpush1.bf16.msra.mxu0 %v384
  %411 = vmatprep.subr.bf16.mxu0 0
  %412 = vmatpush1.bf16.msra.mxu0 %v383
  %413 = vmatprep.subr.bf16.mxu0 0
  %414 = vmatpush1.bf16.msra.mxu0 %v382
  %415 = vmatprep.subr.bf16.mxu0 0
  %416 = vmatpush1.bf16.msra.mxu0 %v381
  %417 = vmatprep.subr.bf16.mxu0 0
  %418 = vmatpush1.bf16.msra.mxu0 %v380
  %419 = vmatprep.subr.bf16.mxu0 0
  %420 = vmatpush1.bf16.msra.mxu0 %v379
  %421 = vmatprep.subr.bf16.mxu0 0
  %422 = vmatpush1.bf16.msra.mxu0 %v378
  %423 = vmatprep.subr.bf16.mxu0 0
  %424 = vmatpush1.bf16.msra.mxu0 %v377
  %425 = vmatprep.subr.bf16.mxu0 0
  %426 = vmatpush2.bf16.msra.mxu0 %v392
  %427 = vmatprep.subr.bf16.mxu0 0
  %428 = vmatpush2.bf16.msra.mxu0 %v391
  %429 = vmatprep.subr.bf16.mxu0 0
  %430 = vmatpush2.bf16.msra.mxu0 %v390
  %431 = vmatprep.subr.bf16.mxu0 0
  %432 = vmatpush2.bf16.msra.mxu0 %v389
  %433 = vmatprep.subr.bf16.mxu0 0
  %434 = vmatpush2.bf16.msra.mxu0 %v388
  %435 = vmatprep.subr.bf16.mxu0 0
  %436 = vmatpush2.bf16.msra.mxu0 %v387
  %437 = vmatprep.subr.bf16.mxu0 0
  %438 = vmatpush2.bf16.msra.mxu0 %v386
  %439 = vmatprep.subr.bf16.mxu0 0
  %440 = vmatpush2.bf16.msra.mxu0 %v385
  %441 = vmatprep.mubr.bf16.mxu0 %v250
  %442 = vmatmul.mubr.bf16.gmra.mxu0 %v249
  %v443 = vpop.f32.mrf.mxu0
  %v444 = vadd.f32 0.0, %v443
  %v445 = vpop.f32.mrf.mxu0
  %v446 = vpop.f32.mrf.mxu0
  %v447 = vadd.f32 0.0, %v446
  %v448 = vpop.f32.mrf.mxu0
  %449 = vmatprep.mubr.bf16.mxu0 %v252
  %450 = vmatmul.mubr.bf16.gmra.mxu0 %v251
  %v451 = vpop.f32.mrf.mxu0
  %v452 = vadd.f32 0.0, %v451
  %v453 = vpop.f32.mrf.mxu0
  %v454 = vpop.f32.mrf.mxu0
  %v455 = vadd.f32 0.0, %v454
  %v456 = vpop.f32.mrf.mxu0
  %457 = vmatprep.mubr.bf16.mxu0 %v254
  %458 = vmatmul.mubr.bf16.gmra.mxu0 %v253
  %v459 = vpop.f32.mrf.mxu0
  %v460 = vadd.f32 0.0, %v459
  %v461 = vpop.f32.mrf.mxu0
  %v462 = vpop.f32.mrf.mxu0
  %v463 = vadd.f32 0.0, %v462
  %v464 = vpop.f32.mrf.mxu0
  %465 = vmatprep.mubr.bf16.mxu0 %v256
  %466 = vmatmul.mubr.bf16.gmra.mxu0 %v255
  %v467 = vpop.f32.mrf.mxu0
  %v468 = vadd.f32 0.0, %v467
  %v469 = vpop.f32.mrf.mxu0
  %v470 = vpop.f32.mrf.mxu0
  %v471 = vadd.f32 0.0, %v470
  %v472 = vpop.f32.mrf.mxu0
  %473 = vmatprep.mubr.bf16.mxu0 %v258
  %474 = vmatmul.mubr.bf16.gmra.mxu0 %v257
  %v475 = vpop.f32.mrf.mxu0
  %v476 = vadd.f32 0.0, %v475
  %v477 = vpop.f32.mrf.mxu0
  %v478 = vpop.f32.mrf.mxu0
  %v479 = vadd.f32 0.0, %v478
  %v480 = vpop.f32.mrf.mxu0
  %481 = vmatprep.mubr.bf16.mxu0 %v260
  %482 = vmatmul.mubr.bf16.gmra.mxu0 %v259
  %v483 = vpop.f32.mrf.mxu0
  %v484 = vadd.f32 0.0, %v483
  %v485 = vpop.f32.mrf.mxu0
  %v486 = vpop.f32.mrf.mxu0
  %v487 = vadd.f32 0.0, %v486
  %v488 = vpop.f32.mrf.mxu0
  %489 = vmatprep.mubr.bf16.mxu0 %v262
  %490 = vmatmul.mubr.bf16.gmra.mxu0 %v261
  %v491 = vpop.f32.mrf.mxu0
  %v492 = vadd.f32 0.0, %v491
  %v493 = vpop.f32.mrf.mxu0
  %v494 = vpop.f32.mrf.mxu0
  %v495 = vadd.f32 0.0, %v494
  %v496 = vpop.f32.mrf.mxu0
  %497 = vmatprep.mubr.bf16.mxu0 %v264
  %498 = vmatmul.mubr.bf16.gmra.mxu0 %v263
  %v499 = vpop.f32.mrf.mxu0
  %v500 = vadd.f32 0.0, %v499
  %v501 = vpop.f32.mrf.mxu0
  %v502 = vpop.f32.mrf.mxu0
  %v503 = vadd.f32 0.0, %v502
  %v504 = vpop.f32.mrf.mxu0
  %505 = vmatprep.mubr.bf16.mxu0 %v266
  %506 = vmatmul.mubr.bf16.gmra.mxu0 %v265
  %v507 = vpop.f32.mrf.mxu0
  %v508 = vadd.f32 0.0, %v507
  %v509 = vpop.f32.mrf.mxu0
  %v510 = vpop.f32.mrf.mxu0
  %v511 = vadd.f32 0.0, %v510
  %v512 = vpop.f32.mrf.mxu0
  %513 = vmatprep.mubr.bf16.mxu0 %v268
  %514 = vmatmul.mubr.bf16.gmra.mxu0 %v267
  %v515 = vpop.f32.mrf.mxu0
  %v516 = vadd.f32 0.0, %v515
  %v517 = vpop.f32.mrf.mxu0
  %v518 = vpop.f32.mrf.mxu0
  %v519 = vadd.f32 0.0, %v518
  %v520 = vpop.f32.mrf.mxu0
  %521 = vmatprep.mubr.bf16.mxu0 %v270
  %522 = vmatmul.mubr.bf16.gmra.mxu0 %v269
  %v523 = vpop.f32.mrf.mxu0
  %v524 = vadd.f32 0.0, %v523
  %v525 = vpop.f32.mrf.mxu0
  %v526 = vpop.f32.mrf.mxu0
  %v527 = vadd.f32 0.0, %v526
  %v528 = vpop.f32.mrf.mxu0
  %529 = vmatprep.mubr.bf16.mxu0 %v272
  %530 = vmatmul.mubr.bf16.gmra.mxu0 %v271
  %v531 = vpop.f32.mrf.mxu0
  %v532 = vadd.f32 0.0, %v531
  %v533 = vpop.f32.mrf.mxu0
  %v534 = vpop.f32.mrf.mxu0
  %v535 = vadd.f32 0.0, %v534
  %v536 = vpop.f32.mrf.mxu0
  %537 = vmatprep.mubr.bf16.mxu0 %v274
  %538 = vmatmul.mubr.bf16.gmra.mxu0 %v273
  %v539 = vpop.f32.mrf.mxu0
  %v540 = vadd.f32 0.0, %v539
  %v541 = vpop.f32.mrf.mxu0
  %v542 = vpop.f32.mrf.mxu0
  %v543 = vadd.f32 0.0, %v542
  %v544 = vpop.f32.mrf.mxu0
  %545 = vmatprep.mubr.bf16.mxu0 %v276
  %546 = vmatmul.mubr.bf16.gmra.mxu0 %v275
  %v547 = vpop.f32.mrf.mxu0
  %v548 = vadd.f32 0.0, %v547
  %v549 = vpop.f32.mrf.mxu0
  %v550 = vpop.f32.mrf.mxu0
  %v551 = vadd.f32 0.0, %v550
  %v552 = vpop.f32.mrf.mxu0
  %553 = vmatprep.mubr.bf16.mxu0 %v278
  %554 = vmatmul.mubr.bf16.gmra.mxu0 %v277
  %v555 = vpop.f32.mrf.mxu0
  %v556 = vadd.f32 0.0, %v555
  %v557 = vpop.f32.mrf.mxu0
  %v558 = vpop.f32.mrf.mxu0
  %v559 = vadd.f32 0.0, %v558
  %v560 = vpop.f32.mrf.mxu0
  %561 = vmatprep.mubr.bf16.mxu0 %v280
  %562 = vmatmul.mubr.bf16.gmra.mxu0 %v279
  %v563 = vpop.f32.mrf.mxu0
  %v564 = vadd.f32 0.0, %v563
  %v565 = vpop.f32.mrf.mxu0
  %v566 = vpop.f32.mrf.mxu0
  %v567 = vadd.f32 0.0, %v566
  %v568 = vpop.f32.mrf.mxu0
  %569 = vdwg.mxu0
  %v570 = vadd.f32 %v57, %v444
  %v571 = vadd.f32 %v58, %v447
  %v572 = vadd.f32 %v59, %v452
  %v573 = vadd.f32 %v60, %v455
  %v574 = vadd.f32 %v61, %v460
  %v575 = vadd.f32 %v62, %v463
  %v576 = vadd.f32 %v63, %v468
  %v577 = vadd.f32 %v64, %v471
  %v578 = vadd.f32 %v65, %v476
  %v579 = vadd.f32 %v66, %v479
  %v580 = vadd.f32 %v67, %v484
  %v581 = vadd.f32 %v68, %v487
  %v582 = vadd.f32 %v69, %v492
  %v583 = vadd.f32 %v70, %v495
  %v584 = vadd.f32 %v71, %v500
  %v585 = vadd.f32 %v72, %v503
  %v586 = vadd.f32 %v73, %v508
  %v587 = vadd.f32 %v74, %v511
  %v588 = vadd.f32 %v75, %v516
  %v589 = vadd.f32 %v76, %v519
  %v590 = vadd.f32 %v77, %v524
  %v591 = vadd.f32 %v78, %v527
  %v592 = vadd.f32 %v79, %v532
  %v593 = vadd.f32 %v80, %v535
  %v594 = vadd.f32 %v81, %v540
  %v595 = vadd.f32 %v82, %v543
  %v596 = vadd.f32 %v83, %v548
  %v597 = vadd.f32 %v84, %v551
  %v598 = vadd.f32 %v85, %v556
  %v599 = vadd.f32 %v86, %v559
  %v600 = vadd.f32 %v87, %v564
  %v601 = vadd.f32 %v88, %v567
  %602 = vst [vmem:[#allocation2] sm:$0xff] %v570
  %603 = vst [vmem:[#allocation2 + $0x8] sm:$0xff] %v571
  %604 = vst [vmem:[#allocation2 + $0x10] sm:$0xff] %v572
  %605 = vst [vmem:[#allocation2 + $0x18] sm:$0xff] %v573
  %606 = vst [vmem:[#allocation2 + $0x20] sm:$0xff] %v574
  %607 = vst [vmem:[#allocation2 + $0x28] sm:$0xff] %v575
  %608 = vst [vmem:[#allocation2 + $0x30] sm:$0xff] %v576
  %609 = vst [vmem:[#allocation2 + $0x38] sm:$0xff] %v577
  %610 = vst [vmem:[#allocation2 + $0x40] sm:$0xff] %v578
  %611 = vst [vmem:[#allocation2 + $0x48] sm:$0xff] %v579
  %612 = vst [vmem:[#allocation2 + $0x50] sm:$0xff] %v580
  %613 = vst [vmem:[#allocation2 + $0x58] sm:$0xff] %v581
  %614 = vst [vmem:[#allocation2 + $0x60] sm:$0xff] %v582
  %615 = vst [vmem:[#allocation2 + $0x68] sm:$0xff] %v583
  %616 = vst [vmem:[#allocation2 + $0x70] sm:$0xff] %v584
  %617 = vst [vmem:[#allocation2 + $0x78] sm:$0xff] %v585
  %618 = vst [vmem:[#allocation2 + $0x80] sm:$0xff] %v586
  %619 = vst [vmem:[#allocation2 + $0x88] sm:$0xff] %v587
  %620 = vst [vmem:[#allocation2 + $0x90] sm:$0xff] %v588
  %621 = vst [vmem:[#allocation2 + $0x98] sm:$0xff] %v589
  %622 = vst [vmem:[#allocation2 + $0xa0] sm:$0xff] %v590
  %623 = vst [vmem:[#allocation2 + $0xa8] sm:$0xff] %v591
  %624 = vst [vmem:[#allocation2 + $0xb0] sm:$0xff] %v592
  %625 = vst [vmem:[#allocation2 + $0xb8] sm:$0xff] %v593
  %626 = vst [vmem:[#allocation2 + $0xc0] sm:$0xff] %v594
  %627 = vst [vmem:[#allocation2 + $0xc8] sm:$0xff] %v595
  %628 = vst [vmem:[#allocation2 + $0xd0] sm:$0xff] %v596
  %629 = vst [vmem:[#allocation2 + $0xd8] sm:$0xff] %v597
  %630 = vst [vmem:[#allocation2 + $0xe0] sm:$0xff] %v598
  %631 = vst [vmem:[#allocation2 + $0xe8] sm:$0xff] %v599
  %632 = vst [vmem:[#allocation2 + $0xf0] sm:$0xff] %v600
  %633 = vst [vmem:[#allocation2 + $0xf8] sm:$0xff] %v601
  // Predicated region
  $region26: #{cheb_gcn2_forward.3} parent=0 // pred_check
    %p634 = pneg %p21
  $region27: #{cheb_gcn2_forward.3} parent=0 // pred_check_branch
    %636 = sbr.rel (%p634) target = $region29
  $region28: #{cheb_gcn2_forward.3} parent=0 // pred_region
    %v637 = vld [vmem:[%s2] sm:$0xf]
    %v638 = vld [vmem:[%s2 + $0x4] sm:$0xf]
    %v639 = vld [vmem:[%s2 + $0x8] sm:$0xf]
    %v640 = vld [vmem:[%s2 + $0xc] sm:$0xf]
    %v641 = vld [vmem:[%s2 + $0x10] sm:$0xf]
    %v642 = vld [vmem:[%s2 + $0x14] sm:$0xf]
    %v643 = vld [vmem:[%s2 + $0x18] sm:$0xf]
    %v644 = vld [vmem:[%s2 + $0x1c] sm:$0xf]
    %v645 = vld [vmem:[%s2 + $0x20] sm:$0xf]
    %v646 = vld [vmem:[%s2 + $0x24] sm:$0xf]
    %v647 = vld [vmem:[%s2 + $0x28] sm:$0xf]
    %v648 = vld [vmem:[%s2 + $0x2c] sm:$0xf]
    %v649 = vld [vmem:[%s2 + $0x30] sm:$0xf]
    %v650 = vld [vmem:[%s2 + $0x34] sm:$0xf]
    %v651 = vld [vmem:[%s2 + $0x38] sm:$0xf]
    %v652 = vld [vmem:[%s2 + $0x3c] sm:$0xf]
    %v653 = vld [vmem:[%s2 + $0x40] sm:$0xf]
    %v654 = vld [vmem:[%s2 + $0x44] sm:$0xf]
    %v655 = vld [vmem:[%s2 + $0x48] sm:$0xf]
    %v656 = vld [vmem:[%s2 + $0x4c] sm:$0xf]
    %v657 = vld [vmem:[%s2 + $0x50] sm:$0xf]
    %v658 = vld [vmem:[%s2 + $0x54] sm:$0xf]
    %v659 = vld [vmem:[%s2 + $0x58] sm:$0xf]
    %v660 = vld [vmem:[%s2 + $0x5c] sm:$0xf]
    %v661 = vld [vmem:[%s2 + $0x60] sm:$0xf]
    %v662 = vld [vmem:[%s2 + $0x64] sm:$0xf]
    %v663 = vld [vmem:[%s2 + $0x68] sm:$0xf]
    %v664 = vld [vmem:[%s2 + $0x6c] sm:$0xf]
    %v665 = vld [vmem:[%s2 + $0x70] sm:$0xf]
    %v666 = vld [vmem:[%s2 + $0x74] sm:$0xf]
    %v667 = vld [vmem:[%s2 + $0x78] sm:$0xf]
    %v668 = vld [vmem:[%s2 + $0x7c] sm:$0xf]
    %v669 = vld [vmem:[#allocation2] sm:$0xff]
    %v670 = vld [vmem:[#allocation2 + $0x8] sm:$0xff]
    %v671 = vld [vmem:[#allocation2 + $0x10] sm:$0xff]
    %v672 = vld [vmem:[#allocation2 + $0x18] sm:$0xff]
    %v673 = vld [vmem:[#allocation2 + $0x20] sm:$0xff]
    %v674 = vld [vmem:[#allocation2 + $0x28] sm:$0xff]
    %v675 = vld [vmem:[#allocation2 + $0x30] sm:$0xff]
    %v676 = vld [vmem:[#allocation2 + $0x38] sm:$0xff]
    %v677 = vld [vmem:[#allocation2 + $0x40] sm:$0xff]
    %v678 = vld [vmem:[#allocation2 + $0x48] sm:$0xff]
    %v679 = vld [vmem:[#allocation2 + $0x50] sm:$0xff]
    %v680 = vld [vmem:[#allocation2 + $0x58] sm:$0xff]
    %v681 = vld [vmem:[#allocation2 + $0x60] sm:$0xff]
    %v682 = vld [vmem:[#allocation2 + $0x68] sm:$0xff]
    %v683 = vld [vmem:[#allocation2 + $0x70] sm:$0xff]
    %v684 = vld [vmem:[#allocation2 + $0x78] sm:$0xff]
    %v685 = vld [vmem:[#allocation2 + $0x80] sm:$0xff]
    %v686 = vld [vmem:[#allocation2 + $0x88] sm:$0xff]
    %v687 = vld [vmem:[#allocation2 + $0x90] sm:$0xff]
    %v688 = vld [vmem:[#allocation2 + $0x98] sm:$0xff]
    %v689 = vld [vmem:[#allocation2 + $0xa0] sm:$0xff]
    %v690 = vld [vmem:[#allocation2 + $0xa8] sm:$0xff]
    %v691 = vld [vmem:[#allocation2 + $0xb0] sm:$0xff]
    %v692 = vld [vmem:[#allocation2 + $0xb8] sm:$0xff]
    %v693 = vld [vmem:[#allocation2 + $0xc0] sm:$0xff]
    %v694 = vld [vmem:[#allocation2 + $0xc8] sm:$0xff]
    %v695 = vld [vmem:[#allocation2 + $0xd0] sm:$0xff]
    %v696 = vld [vmem:[#allocation2 + $0xd8] sm:$0xff]
    %v697 = vld [vmem:[#allocation2 + $0xe0] sm:$0xff]
    %v698 = vld [vmem:[#allocation2 + $0xe8] sm:$0xff]
    %v699 = vld [vmem:[#allocation2 + $0xf0] sm:$0xff]
    %v700 = vld [vmem:[#allocation2 + $0xf8] sm:$0xff]
    %v701 = vpack.c.bf16 %v670, %v669
    %v702 = vpack.c.bf16 %v672, %v671
    %v703 = vpack.c.bf16 %v674, %v673
    %v704 = vpack.c.bf16 %v676, %v675
    %v705 = vpack.c.bf16 %v678, %v677
    %v706 = vpack.c.bf16 %v680, %v679
    %v707 = vpack.c.bf16 %v682, %v681
    %v708 = vpack.c.bf16 %v684, %v683
    %v709 = vpack.c.bf16 %v686, %v685
    %v710 = vpack.c.bf16 %v688, %v687
    %v711 = vpack.c.bf16 %v690, %v689
    %v712 = vpack.c.bf16 %v692, %v691
    %v713 = vpack.c.bf16 %v694, %v693
    %v714 = vpack.c.bf16 %v696, %v695
    %v715 = vpack.c.bf16 %v698, %v697
    %v716 = vpack.c.bf16 %v700, %v699
    %v749 = vunpack.c.l.b16 %v637
    %v750 = vunpack.c.l.b16 %v638
    %v751 = vunpack.c.l.b16 %v639
    %v752 = vunpack.c.l.b16 %v640
    %v753 = vunpack.c.l.b16 %v641
    %v754 = vunpack.c.l.b16 %v642
    %v755 = vunpack.c.l.b16 %v643
    %v756 = vunpack.c.l.b16 %v644
    %v757 = vunpack.c.l.b16 %v645
    %v758 = vunpack.c.l.b16 %v646
    %v759 = vunpack.c.l.b16 %v647
    %v760 = vunpack.c.l.b16 %v648
    %v761 = vunpack.c.l.b16 %v649
    %v762 = vunpack.c.l.b16 %v650
    %v763 = vunpack.c.l.b16 %v651
    %v764 = vunpack.c.l.b16 %v652
    %v765 = vunpack.c.l.b16 %v653
    %v766 = vunpack.c.l.b16 %v654
    %v767 = vunpack.c.l.b16 %v655
    %v768 = vunpack.c.l.b16 %v656
    %v769 = vunpack.c.l.b16 %v657
    %v770 = vunpack.c.l.b16 %v658
    %v771 = vunpack.c.l.b16 %v659
    %v772 = vunpack.c.l.b16 %v660
    %v773 = vunpack.c.l.b16 %v661
    %v774 = vunpack.c.l.b16 %v662
    %v775 = vunpack.c.l.b16 %v663
    %v776 = vunpack.c.l.b16 %v664
    %v777 = vunpack.c.l.b16 %v665
    %v778 = vunpack.c.l.b16 %v666
    %v779 = vunpack.c.l.b16 %v667
    %v780 = vunpack.c.l.b16 %v668
    %v781 = vpack.c.b16 %v750, %v749
    %v782 = vpack.c.b16 %v752, %v751
    %v783 = vpack.c.b16 %v754, %v753
    %v784 = vpack.c.b16 %v756, %v755
    %v785 = vpack.c.b16 %v758, %v757
    %v786 = vpack.c.b16 %v760, %v759
    %v787 = vpack.c.b16 %v762, %v761
    %v788 = vpack.c.b16 %v764, %v763
    %v789 = vpack.c.b16 %v766, %v765
    %v790 = vpack.c.b16 %v768, %v767
    %v791 = vpack.c.b16 %v770, %v769
    %v792 = vpack.c.b16 %v772, %v771
    %v793 = vpack.c.b16 %v774, %v773
    %v794 = vpack.c.b16 %v776, %v775
    %v795 = vpack.c.b16 %v778, %v777
    %v796 = vpack.c.b16 %v780, %v779
    %v813 = vld [vmem:[%s3] sm:$0xf]
    %v814 = vld [vmem:[%s3 + $0x4] sm:$0xf]
    %v815 = vld [vmem:[%s3 + $0x8] sm:$0xf]
    %v816 = vld [vmem:[%s3 + $0xc] sm:$0xf]
    %v817 = vld [vmem:[%s3 + $0x10] sm:$0xf]
    %v818 = vld [vmem:[%s3 + $0x14] sm:$0xf]
    %v819 = vld [vmem:[%s3 + $0x18] sm:$0xf]
    %v820 = vld [vmem:[%s3 + $0x1c] sm:$0xf]
    %v821 = vld [vmem:[%s3 + $0x20] sm:$0xf]
    %v822 = vld [vmem:[%s3 + $0x24] sm:$0xf]
    %v823 = vld [vmem:[%s3 + $0x28] sm:$0xf]
    %v824 = vld [vmem:[%s3 + $0x2c] sm:$0xf]
    %v825 = vld [vmem:[%s3 + $0x30] sm:$0xf]
    %v826 = vld [vmem:[%s3 + $0x34] sm:$0xf]
    %v827 = vld [vmem:[%s3 + $0x38] sm:$0xf]
    %v828 = vld [vmem:[%s3 + $0x3c] sm:$0xf]
    %v829 = vld [vmem:[%s3 + $0x40] sm:$0xf]
    %v830 = vld [vmem:[%s3 + $0x44] sm:$0xf]
    %v831 = vld [vmem:[%s3 + $0x48] sm:$0xf]
    %v832 = vld [vmem:[%s3 + $0x4c] sm:$0xf]
    %v833 = vld [vmem:[%s3 + $0x50] sm:$0xf]
    %v834 = vld [vmem:[%s3 + $0x54] sm:$0xf]
    %v835 = vld [vmem:[%s3 + $0x58] sm:$0xf]
    %v836 = vld [vmem:[%s3 + $0x5c] sm:$0xf]
    %v837 = vld [vmem:[%s3 + $0x60] sm:$0xf]
    %v838 = vld [vmem:[%s3 + $0x64] sm:$0xf]
    %v839 = vld [vmem:[%s3 + $0x68] sm:$0xf]
    %v840 = vld [vmem:[%s3 + $0x6c] sm:$0xf]
    %v841 = vld [vmem:[%s3 + $0x70] sm:$0xf]
    %v842 = vld [vmem:[%s3 + $0x74] sm:$0xf]
    %v843 = vld [vmem:[%s3 + $0x78] sm:$0xf]
    %v844 = vld [vmem:[%s3 + $0x7c] sm:$0xf]
    %v845 = vld [vmem:[%s4] sm:$0x1]
    %v847 = vlaneseq
    %v848 = vshrl.u32 %v847, 7
    %v849 = vsub.s32 0, %v848
    %v850 = vrot.slane %v845, %v849
    %v884 = vunpack.c.l.b16 %v813
    %v885 = vunpack.c.l.b16 %v814
    %v886 = vunpack.c.l.b16 %v815
    %v887 = vunpack.c.l.b16 %v816
    %v888 = vunpack.c.l.b16 %v817
    %v889 = vunpack.c.l.b16 %v818
    %v890 = vunpack.c.l.b16 %v819
    %v891 = vunpack.c.l.b16 %v820
    %v892 = vunpack.c.l.b16 %v821
    %v893 = vunpack.c.l.b16 %v822
    %v894 = vunpack.c.l.b16 %v823
    %v895 = vunpack.c.l.b16 %v824
    %v896 = vunpack.c.l.b16 %v825
    %v897 = vunpack.c.l.b16 %v826
    %v898 = vunpack.c.l.b16 %v827
    %v899 = vunpack.c.l.b16 %v828
    %v900 = vunpack.c.l.b16 %v829
    %v901 = vunpack.c.l.b16 %v830
    %v902 = vunpack.c.l.b16 %v831
    %v903 = vunpack.c.l.b16 %v832
    %v904 = vunpack.c.l.b16 %v833
    %v905 = vunpack.c.l.b16 %v834
    %v906 = vunpack.c.l.b16 %v835
    %v907 = vunpack.c.l.b16 %v836
    %v908 = vunpack.c.l.b16 %v837
    %v909 = vunpack.c.l.b16 %v838
    %v910 = vunpack.c.l.b16 %v839
    %v911 = vunpack.c.l.b16 %v840
    %v912 = vunpack.c.l.b16 %v841
    %v913 = vunpack.c.l.b16 %v842
    %v914 = vunpack.c.l.b16 %v843
    %v915 = vunpack.c.l.b16 %v844
    %v916 = vpack.c.b16 %v885, %v884
    %v917 = vpack.c.b16 %v887, %v886
    %v918 = vpack.c.b16 %v889, %v888
    %v919 = vpack.c.b16 %v891, %v890
    %v920 = vpack.c.b16 %v893, %v892
    %v921 = vpack.c.b16 %v895, %v894
    %v922 = vpack.c.b16 %v897, %v896
    %v923 = vpack.c.b16 %v899, %v898
    %v924 = vpack.c.b16 %v901, %v900
    %v925 = vpack.c.b16 %v903, %v902
    %v926 = vpack.c.b16 %v905, %v904
    %v927 = vpack.c.b16 %v907, %v906
    %v928 = vpack.c.b16 %v909, %v908
    %v929 = vpack.c.b16 %v911, %v910
    %v930 = vpack.c.b16 %v913, %v912
    %v931 = vpack.c.b16 %v915, %v914
    %948 = vmatprep.subr.bf16.mxu0 0
    %949 = vmatpush1.bf16.msra.mxu0 %v923
    %950 = vmatprep.subr.bf16.mxu0 0
    %951 = vmatpush1.bf16.msra.mxu0 %v922
    %952 = vmatprep.subr.bf16.mxu0 0
    %953 = vmatpush1.bf16.msra.mxu0 %v921
    %954 = vmatprep.subr.bf16.mxu0 0
    %955 = vmatpush1.bf16.msra.mxu0 %v920
    %956 = vmatprep.subr.bf16.mxu0 0
    %957 = vmatpush1.bf16.msra.mxu0 %v919
    %958 = vmatprep.subr.bf16.mxu0 0
    %959 = vmatpush1.bf16.msra.mxu0 %v918
    %960 = vmatprep.subr.bf16.mxu0 0
    %961 = vmatpush1.bf16.msra.mxu0 %v917
    %962 = vmatprep.subr.bf16.mxu0 0
    %963 = vmatpush1.bf16.msra.mxu0 %v916
    %964 = vmatprep.subr.bf16.mxu0 0
    %965 = vmatpush2.bf16.msra.mxu0 %v931
    %966 = vmatprep.subr.bf16.mxu0 0
    %967 = vmatpush2.bf16.msra.mxu0 %v930
    %968 = vmatprep.subr.bf16.mxu0 0
    %969 = vmatpush2.bf16.msra.mxu0 %v929
    %970 = vmatprep.subr.bf16.mxu0 0
    %971 = vmatpush2.bf16.msra.mxu0 %v928
    %972 = vmatprep.subr.bf16.mxu0 0
    %973 = vmatpush2.bf16.msra.mxu0 %v927
    %974 = vmatprep.subr.bf16.mxu0 0
    %975 = vmatpush2.bf16.msra.mxu0 %v926
    %976 = vmatprep.subr.bf16.mxu0 0
    %977 = vmatpush2.bf16.msra.mxu0 %v925
    %978 = vmatprep.subr.bf16.mxu0 0
    %979 = vmatpush2.bf16.msra.mxu0 %v924
    %980 = vmatprep.mubr.bf16.mxu0 %v701
    %981 = vmatmul.mubr.bf16.gmra.mxu0 %v781
    %v982 = vpop.f32.mrf.mxu0
    %v983 = vadd.f32 %v850, %v982
    %v984 = vpop.f32.mrf.mxu0
    %v985 = vpop.f32.mrf.mxu0
    %v986 = vadd.f32 %v850, %v985
    %v987 = vpop.f32.mrf.mxu0
    %988 = vmatprep.mubr.bf16.mxu0 %v702
    %989 = vmatmul.mubr.bf16.gmra.mxu0 %v782
    %v990 = vpop.f32.mrf.mxu0
    %v991 = vadd.f32 %v850, %v990
    %v992 = vpop.f32.mrf.mxu0
    %v993 = vpop.f32.mrf.mxu0
    %v994 = vadd.f32 %v850, %v993
    %v995 = vpop.f32.mrf.mxu0
    %996 = vmatprep.mubr.bf16.mxu0 %v703
    %997 = vmatmul.mubr.bf16.gmra.mxu0 %v783
    %v998 = vpop.f32.mrf.mxu0
    %v999 = vadd.f32 %v850, %v998
    %v1000 = vpop.f32.mrf.mxu0
    %v1001 = vpop.f32.mrf.mxu0
    %v1002 = vadd.f32 %v850, %v1001
    %v1003 = vpop.f32.mrf.mxu0
    %1004 = vmatprep.mubr.bf16.mxu0 %v704
    %1005 = vmatmul.mubr.bf16.gmra.mxu0 %v784
    %v1006 = vpop.f32.mrf.mxu0
    %v1007 = vadd.f32 %v850, %v1006
    %v1008 = vpop.f32.mrf.mxu0
    %v1009 = vpop.f32.mrf.mxu0
    %v1010 = vadd.f32 %v850, %v1009
    %v1011 = vpop.f32.mrf.mxu0
    %1012 = vmatprep.mubr.bf16.mxu0 %v705
    %1013 = vmatmul.mubr.bf16.gmra.mxu0 %v785
    %v1014 = vpop.f32.mrf.mxu0
    %v1015 = vadd.f32 %v850, %v1014
    %v1016 = vpop.f32.mrf.mxu0
    %v1017 = vpop.f32.mrf.mxu0
    %v1018 = vadd.f32 %v850, %v1017
    %v1019 = vpop.f32.mrf.mxu0
    %1020 = vmatprep.mubr.bf16.mxu0 %v706
    %1021 = vmatmul.mubr.bf16.gmra.mxu0 %v786
    %v1022 = vpop.f32.mrf.mxu0
    %v1023 = vadd.f32 %v850, %v1022
    %v1024 = vpop.f32.mrf.mxu0
    %v1025 = vpop.f32.mrf.mxu0
    %v1026 = vadd.f32 %v850, %v1025
    %v1027 = vpop.f32.mrf.mxu0
    %1028 = vmatprep.mubr.bf16.mxu0 %v707
    %1029 = vmatmul.mubr.bf16.gmra.mxu0 %v787
    %v1030 = vpop.f32.mrf.mxu0
    %v1031 = vadd.f32 %v850, %v1030
    %v1032 = vpop.f32.mrf.mxu0
    %v1033 = vpop.f32.mrf.mxu0
    %v1034 = vadd.f32 %v850, %v1033
    %v1035 = vpop.f32.mrf.mxu0
    %1036 = vmatprep.mubr.bf16.mxu0 %v708
    %1037 = vmatmul.mubr.bf16.gmra.mxu0 %v788
    %v1038 = vpop.f32.mrf.mxu0
    %v1039 = vadd.f32 %v850, %v1038
    %v1040 = vpop.f32.mrf.mxu0
    %v1041 = vpop.f32.mrf.mxu0
    %v1042 = vadd.f32 %v850, %v1041
    %v1043 = vpop.f32.mrf.mxu0
    %1044 = vmatprep.mubr.bf16.mxu0 %v709
    %1045 = vmatmul.mubr.bf16.gmra.mxu0 %v789
    %v1046 = vpop.f32.mrf.mxu0
    %v1047 = vadd.f32 %v850, %v1046
    %v1048 = vpop.f32.mrf.mxu0
    %v1049 = vpop.f32.mrf.mxu0
    %v1050 = vadd.f32 %v850, %v1049
    %v1051 = vpop.f32.mrf.mxu0
    %1052 = vmatprep.mubr.bf16.mxu0 %v710
    %1053 = vmatmul.mubr.bf16.gmra.mxu0 %v790
    %v1054 = vpop.f32.mrf.mxu0
    %v1055 = vadd.f32 %v850, %v1054
    %v1056 = vpop.f32.mrf.mxu0
    %v1057 = vpop.f32.mrf.mxu0
    %v1058 = vadd.f32 %v850, %v1057
    %v1059 = vpop.f32.mrf.mxu0
    %1060 = vmatprep.mubr.bf16.mxu0 %v711
    %1061 = vmatmul.mubr.bf16.gmra.mxu0 %v791
    %v1062 = vpop.f32.mrf.mxu0
    %v1063 = vadd.f32 %v850, %v1062
    %v1064 = vpop.f32.mrf.mxu0
    %v1065 = vpop.f32.mrf.mxu0
    %v1066 = vadd.f32 %v850, %v1065
    %v1067 = vpop.f32.mrf.mxu0
    %1068 = vmatprep.mubr.bf16.mxu0 %v712
    %1069 = vmatmul.mubr.bf16.gmra.mxu0 %v792
    %v1070 = vpop.f32.mrf.mxu0
    %v1071 = vadd.f32 %v850, %v1070
    %v1072 = vpop.f32.mrf.mxu0
    %v1073 = vpop.f32.mrf.mxu0
    %v1074 = vadd.f32 %v850, %v1073
    %v1075 = vpop.f32.mrf.mxu0
    %1076 = vmatprep.mubr.bf16.mxu0 %v713
    %1077 = vmatmul.mubr.bf16.gmra.mxu0 %v793
    %v1078 = vpop.f32.mrf.mxu0
    %v1079 = vadd.f32 %v850, %v1078
    %v1080 = vpop.f32.mrf.mxu0
    %v1081 = vpop.f32.mrf.mxu0
    %v1082 = vadd.f32 %v850, %v1081
    %v1083 = vpop.f32.mrf.mxu0
    %1084 = vmatprep.mubr.bf16.mxu0 %v714
    %1085 = vmatmul.mubr.bf16.gmra.mxu0 %v794
    %v1086 = vpop.f32.mrf.mxu0
    %v1087 = vadd.f32 %v850, %v1086
    %v1088 = vpop.f32.mrf.mxu0
    %v1089 = vpop.f32.mrf.mxu0
    %v1090 = vadd.f32 %v850, %v1089
    %v1091 = vpop.f32.mrf.mxu0
    %1092 = vmatprep.mubr.bf16.mxu0 %v715
    %1093 = vmatmul.mubr.bf16.gmra.mxu0 %v795
    %v1094 = vpop.f32.mrf.mxu0
    %v1095 = vadd.f32 %v850, %v1094
    %v1096 = vpop.f32.mrf.mxu0
    %v1097 = vpop.f32.mrf.mxu0
    %v1098 = vadd.f32 %v850, %v1097
    %v1099 = vpop.f32.mrf.mxu0
    %1100 = vmatprep.mubr.bf16.mxu0 %v716
    %1101 = vmatmul.mubr.bf16.gmra.mxu0 %v796
    %v1102 = vpop.f32.mrf.mxu0
    %v1103 = vadd.f32 %v850, %v1102
    %v1104 = vpop.f32.mrf.mxu0
    %v1105 = vpop.f32.mrf.mxu0
    %v1106 = vadd.f32 %v850, %v1105
    %v1107 = vpop.f32.mrf.mxu0
    %1108 = vdwg.mxu0
    %1109 = vst [vmem:[%s5] sm:$0xff] %v983
    %1110 = vst [vmem:[%s5 + $0x8] sm:$0xff] %v986
    %1111 = vst [vmem:[%s5 + $0x10] sm:$0xff] %v991
    %1112 = vst [vmem:[%s5 + $0x18] sm:$0xff] %v994
    %1113 = vst [vmem:[%s5 + $0x20] sm:$0xff] %v999
    %1114 = vst [vmem:[%s5 + $0x28] sm:$0xff] %v1002
    %1115 = vst [vmem:[%s5 + $0x30] sm:$0xff] %v1007
    %1116 = vst [vmem:[%s5 + $0x38] sm:$0xff] %v1010
    %1117 = vst [vmem:[%s5 + $0x40] sm:$0xff] %v1015
    %1118 = vst [vmem:[%s5 + $0x48] sm:$0xff] %v1018
    %1119 = vst [vmem:[%s5 + $0x50] sm:$0xff] %v1023
    %1120 = vst [vmem:[%s5 + $0x58] sm:$0xff] %v1026
    %1121 = vst [vmem:[%s5 + $0x60] sm:$0xff] %v1031
    %1122 = vst [vmem:[%s5 + $0x68] sm:$0xff] %v1034
    %1123 = vst [vmem:[%s5 + $0x70] sm:$0xff] %v1039
    %1124 = vst [vmem:[%s5 + $0x78] sm:$0xff] %v1042
    %1125 = vst [vmem:[%s5 + $0x80] sm:$0xff] %v1047
    %1126 = vst [vmem:[%s5 + $0x88] sm:$0xff] %v1050
    %1127 = vst [vmem:[%s5 + $0x90] sm:$0xff] %v1055
    %1128 = vst [vmem:[%s5 + $0x98] sm:$0xff] %v1058
    %1129 = vst [vmem:[%s5 + $0xa0] sm:$0xff] %v1063
    %1130 = vst [vmem:[%s5 + $0xa8] sm:$0xff] %v1066
    %1131 = vst [vmem:[%s5 + $0xb0] sm:$0xff] %v1071
    %1132 = vst [vmem:[%s5 + $0xb8] sm:$0xff] %v1074
    %1133 = vst [vmem:[%s5 + $0xc0] sm:$0xff] %v1079
    %1134 = vst [vmem:[%s5 + $0xc8] sm:$0xff] %v1082
    %1135 = vst [vmem:[%s5 + $0xd0] sm:$0xff] %v1087
    %1136 = vst [vmem:[%s5 + $0xd8] sm:$0xff] %v1090
    %1137 = vst [vmem:[%s5 + $0xe0] sm:$0xff] %v1095
    %1138 = vst [vmem:[%s5 + $0xe8] sm:$0xff] %v1098
    %1139 = vst [vmem:[%s5 + $0xf0] sm:$0xff] %v1103
    %1140 = vst [vmem:[%s5 + $0xf8] sm:$0xff] %v1106
  $region29: #{cheb_gcn2_forward.3} parent=0 // pred_fallthru
    _
  // Predicated region
  $region30: #{cheb_gcn2_forward.3} parent=0 // pred_check
    _
  $region31: #{cheb_gcn2_forward.3} parent=0 // pred_check_branch
    %1142 = sbr.rel (0) target = $region33
  $region32: #{cheb_gcn2_forward.3} parent=0 // pred_region
    _
  $region33: #{cheb_gcn2_forward.3} parent=0 // pred_fallthru
    _
  // Predicated region
  $region34: #{cheb_gcn2_forward.3} parent=0 // pred_check
    _
  $region35: #{cheb_gcn2_forward.3} parent=0 // pred_check_branch
    %1144 = sbr.rel (0) target = $region37
  $region36: #{cheb_gcn2_forward.3} parent=0 // pred_region
    _
  $region37: #{cheb_gcn2_forward.3} parent=0 // pred_fallthru
    _

// kernel: cheb_gcn2_forward.2
$region0: #{cheb_gcn2_forward.2}
  #allocation0 [shape = 'u32[]', space=smem, size = 0x4, offset = 0x4, fixed_abs, tag = 'smem constant byte address 0x4 - core index']
  #allocation1 [shape = 'u32[144,128]{1,0:T(1,128)}', space=vmem, size = 0x12000, scoped, tag = 'internal scratch']
  #allocation2 [shape = 'f32[256,128]{1,0:T(8,128)}', space=vmem, size = 0x20000, scoped, tag = 'scratch operand']
  %s0 = inlined_call_operand.vmem [shape: bf16[256,256], index: 0, kind: input, shape index: {}]
  %s1 = inlined_call_operand.vmem [shape: bf16[256,128], index: 1, kind: input, shape index: {}, may-alias: {1,2}]
  %s2 = inlined_call_operand.vmem [shape: bf16[256,128], index: 2, kind: input, shape index: {}, may-alias: {1,2}]
  %s3 = inlined_call_operand.vmem [shape: bf16[256,128], index: 3, kind: input, shape index: {}]
  %s4 = inlined_call_operand.vmem [shape: f32[1,128], index: 4, kind: input, shape index: {}]
  %s5 = inlined_call_operand.vmem [shape: bf16[256,128], index: 5, kind: output, shape index: {}]
  %s6 = sld [smem:[#allocation0]]
  $region38: #{cheb_gcn2_forward.2} parent=0
    _
  %s8 = ssub.s32 1, %s6
  %s9 = scalar_select 0, %s8, %s6
  // Predicated region
  $region2: #{cheb_gcn2_forward.2} parent=0 // pred_check
    _
  $region3: #{cheb_gcn2_forward.2} parent=0 // pred_check_branch
    %11 = sbr.rel (0) target = $region5
  $region4: #{cheb_gcn2_forward.2} parent=0 // pred_region
    _
  $region5: #{cheb_gcn2_forward.2} parent=0 // pred_fallthru
    _
  // Predicated region
  $region6: #{cheb_gcn2_forward.2} parent=0 // pred_check
    _
  $region7: #{cheb_gcn2_forward.2} parent=0 // pred_check_branch
    %13 = sbr.rel (0) target = $region9
  $region8: #{cheb_gcn2_forward.2} parent=0 // pred_region
    _
  $region9: #{cheb_gcn2_forward.2} parent=0 // pred_fallthru
    _
  // Predicated region
  $region10: #{cheb_gcn2_forward.2} parent=0 // pred_check
    _
  $region11: #{cheb_gcn2_forward.2} parent=0 // pred_check_branch
    %15 = sbr.rel (0) target = $region13
  $region12: #{cheb_gcn2_forward.2} parent=0 // pred_region
    _
  $region13: #{cheb_gcn2_forward.2} parent=0 // pred_fallthru
    _
  // Predicated region
  $region14: #{cheb_gcn2_forward.2} parent=0 // pred_check
    _
  $region15: #{cheb_gcn2_forward.2} parent=0 // pred_check_branch
    %17 = sbr.rel (0) target = $region17
  $region16: #{cheb_gcn2_forward.2} parent=0 // pred_region
    _
  $region17: #{cheb_gcn2_forward.2} parent=0 // pred_fallthru
    _
  // Predicated region
  $region18: #{cheb_gcn2_forward.2} parent=0 // pred_check
    _
  $region19: #{cheb_gcn2_forward.2} parent=0 // pred_check_branch
    %19 = sbr.rel (0) target = $region21
  $region20: #{cheb_gcn2_forward.2} parent=0 // pred_region
    _
  $region21: #{cheb_gcn2_forward.2} parent=0 // pred_fallthru
    _
  %p21 = scmp.eq.s32.totalorder 0, 0
  // Predicated region
  $region22: #{cheb_gcn2_forward.2} parent=0 // pred_check
    %p22 = pneg %p21
  $region23: #{cheb_gcn2_forward.2} parent=0 // pred_check_branch
    %24 = sbr.rel (%p22) target = $region25
  $region24: #{cheb_gcn2_forward.2} parent=0 // pred_region
    %25 = vst [vmem:[#allocation2] sm:$0xff] 0.0
    %26 = vst [vmem:[#allocation2 + $0x8] sm:$0xff] 0.0
    %27 = vst [vmem:[#allocation2 + $0x10] sm:$0xff] 0.0
    %28 = vst [vmem:[#allocation2 + $0x18] sm:$0xff] 0.0
    %29 = vst [vmem:[#allocation2 + $0x20] sm:$0xff] 0.0
    %30 = vst [vmem:[#allocation2 + $0x28] sm:$0xff] 0.0
    %31 = vst [vmem:[#allocation2 + $0x30] sm:$0xff] 0.0
    %32 = vst [vmem:[#allocation2 + $0x38] sm:$0xff] 0.0
    %33 = vst [vmem:[#allocation2 + $0x40] sm:$0xff] 0.0
    %34 = vst [vmem:[#allocation2 + $0x48] sm:$0xff] 0.0
    %35 = vst [vmem:[#allocation2 + $0x50] sm:$0xff] 0.0
    %36 = vst [vmem:[#allocation2 + $0x58] sm:$0xff] 0.0
    %37 = vst [vmem:[#allocation2 + $0x60] sm:$0xff] 0.0
    %38 = vst [vmem:[#allocation2 + $0x68] sm:$0xff] 0.0
    %39 = vst [vmem:[#allocation2 + $0x70] sm:$0xff] 0.0
    %40 = vst [vmem:[#allocation2 + $0x78] sm:$0xff] 0.0
    %41 = vst [vmem:[#allocation2 + $0x80] sm:$0xff] 0.0
    %42 = vst [vmem:[#allocation2 + $0x88] sm:$0xff] 0.0
    %43 = vst [vmem:[#allocation2 + $0x90] sm:$0xff] 0.0
    %44 = vst [vmem:[#allocation2 + $0x98] sm:$0xff] 0.0
    %45 = vst [vmem:[#allocation2 + $0xa0] sm:$0xff] 0.0
    %46 = vst [vmem:[#allocation2 + $0xa8] sm:$0xff] 0.0
    %47 = vst [vmem:[#allocation2 + $0xb0] sm:$0xff] 0.0
    %48 = vst [vmem:[#allocation2 + $0xb8] sm:$0xff] 0.0
    %49 = vst [vmem:[#allocation2 + $0xc0] sm:$0xff] 0.0
    %50 = vst [vmem:[#allocation2 + $0xc8] sm:$0xff] 0.0
    %51 = vst [vmem:[#allocation2 + $0xd0] sm:$0xff] 0.0
    %52 = vst [vmem:[#allocation2 + $0xd8] sm:$0xff] 0.0
    %53 = vst [vmem:[#allocation2 + $0xe0] sm:$0xff] 0.0
    %54 = vst [vmem:[#allocation2 + $0xe8] sm:$0xff] 0.0
    %55 = vst [vmem:[#allocation2 + $0xf0] sm:$0xff] 0.0
    %56 = vst [vmem:[#allocation2 + $0xf8] sm:$0xff] 0.0
  $region25: #{cheb_gcn2_forward.2} parent=0 // pred_fallthru
    _
  %v57 = vld [vmem:[#allocation2] sm:$0xff]
  %v58 = vld [vmem:[#allocation2 + $0x8] sm:$0xff]
  %v59 = vld [vmem:[#allocation2 + $0x10] sm:$0xff]
  %v60 = vld [vmem:[#allocation2 + $0x18] sm:$0xff]
  %v61 = vld [vmem:[#allocation2 + $0x20] sm:$0xff]
  %v62 = vld [vmem:[#allocation2 + $0x28] sm:$0xff]
  %v63 = vld [vmem:[#allocation2 + $0x30] sm:$0xff]
  %v64 = vld [vmem:[#allocation2 + $0x38] sm:$0xff]
  %v65 = vld [vmem:[#allocation2 + $0x40] sm:$0xff]
  %v66 = vld [vmem:[#allocation2 + $0x48] sm:$0xff]
  %v67 = vld [vmem:[#allocation2 + $0x50] sm:$0xff]
  %v68 = vld [vmem:[#allocation2 + $0x58] sm:$0xff]
  %v69 = vld [vmem:[#allocation2 + $0x60] sm:$0xff]
  %v70 = vld [vmem:[#allocation2 + $0x68] sm:$0xff]
  %v71 = vld [vmem:[#allocation2 + $0x70] sm:$0xff]
  %v72 = vld [vmem:[#allocation2 + $0x78] sm:$0xff]
  %v73 = vld [vmem:[#allocation2 + $0x80] sm:$0xff]
  %v74 = vld [vmem:[#allocation2 + $0x88] sm:$0xff]
  %v75 = vld [vmem:[#allocation2 + $0x90] sm:$0xff]
  %v76 = vld [vmem:[#allocation2 + $0x98] sm:$0xff]
  %v77 = vld [vmem:[#allocation2 + $0xa0] sm:$0xff]
  %v78 = vld [vmem:[#allocation2 + $0xa8] sm:$0xff]
  %v79 = vld [vmem:[#allocation2 + $0xb0] sm:$0xff]
  %v80 = vld [vmem:[#allocation2 + $0xb8] sm:$0xff]
  %v81 = vld [vmem:[#allocation2 + $0xc0] sm:$0xff]
  %v82 = vld [vmem:[#allocation2 + $0xc8] sm:$0xff]
  %v83 = vld [vmem:[#allocation2 + $0xd0] sm:$0xff]
  %v84 = vld [vmem:[#allocation2 + $0xd8] sm:$0xff]
  %v85 = vld [vmem:[#allocation2 + $0xe0] sm:$0xff]
  %v86 = vld [vmem:[#allocation2 + $0xe8] sm:$0xff]
  %v87 = vld [vmem:[#allocation2 + $0xf0] sm:$0xff]
  %v88 = vld [vmem:[#allocation2 + $0xf8] sm:$0xff]
  %v89 = vld [vmem:[%s0] sm:$0xff]
  %v90 = vld [vmem:[%s0 + $0x8] sm:$0xff]
  %v91 = vld [vmem:[%s0 + $0x10] sm:$0xff]
  %v92 = vld [vmem:[%s0 + $0x18] sm:$0xff]
  %v93 = vld [vmem:[%s0 + $0x20] sm:$0xff]
  %v94 = vld [vmem:[%s0 + $0x28] sm:$0xff]
  %v95 = vld [vmem:[%s0 + $0x30] sm:$0xff]
  %v96 = vld [vmem:[%s0 + $0x38] sm:$0xff]
  %v97 = vld [vmem:[%s0 + $0x40] sm:$0xff]
  %v98 = vld [vmem:[%s0 + $0x48] sm:$0xff]
  %v99 = vld [vmem:[%s0 + $0x50] sm:$0xff]
  %v100 = vld [vmem:[%s0 + $0x58] sm:$0xff]
  %v101 = vld [vmem:[%s0 + $0x60] sm:$0xff]
  %v102 = vld [vmem:[%s0 + $0x68] sm:$0xff]
  %v103 = vld [vmem:[%s0 + $0x70] sm:$0xff]
  %v104 = vld [vmem:[%s0 + $0x78] sm:$0xff]
  %v105 = vld [vmem:[%s0 + $0x80] sm:$0xff]
  %v106 = vld [vmem:[%s0 + $0x88] sm:$0xff]
  %v107 = vld [vmem:[%s0 + $0x90] sm:$0xff]
  %v108 = vld [vmem:[%s0 + $0x98] sm:$0xff]
  %v109 = vld [vmem:[%s0 + $0xa0] sm:$0xff]
  %v110 = vld [vmem:[%s0 + $0xa8] sm:$0xff]
  %v111 = vld [vmem:[%s0 + $0xb0] sm:$0xff]
  %v112 = vld [vmem:[%s0 + $0xb8] sm:$0xff]
  %v113 = vld [vmem:[%s0 + $0xc0] sm:$0xff]
  %v114 = vld [vmem:[%s0 + $0xc8] sm:$0xff]
  %v115 = vld [vmem:[%s0 + $0xd0] sm:$0xff]
  %v116 = vld [vmem:[%s0 + $0xd8] sm:$0xff]
  %v117 = vld [vmem:[%s0 + $0xe0] sm:$0xff]
  %v118 = vld [vmem:[%s0 + $0xe8] sm:$0xff]
  %v119 = vld [vmem:[%s0 + $0xf0] sm:$0xff]
  %v120 = vld [vmem:[%s0 + $0xf8] sm:$0xff]
  %v121 = vld [vmem:[%s1] sm:$0xf]
  %v122 = vld [vmem:[%s1 + $0x4] sm:$0xf]
  %v123 = vld [vmem:[%s1 + $0x8] sm:$0xf]
  %v124 = vld [vmem:[%s1 + $0xc] sm:$0xf]
  %v125 = vld [vmem:[%s1 + $0x10] sm:$0xf]
  %v126 = vld [vmem:[%s1 + $0x14] sm:$0xf]
  %v127 = vld [vmem:[%s1 + $0x18] sm:$0xf]
  %v128 = vld [vmem:[%s1 + $0x1c] sm:$0xf]
  %v129 = vld [vmem:[%s1 + $0x20] sm:$0xf]
  %v130 = vld [vmem:[%s1 + $0x24] sm:$0xf]
  %v131 = vld [vmem:[%s1 + $0x28] sm:$0xf]
  %v132 = vld [vmem:[%s1 + $0x2c] sm:$0xf]
  %v133 = vld [vmem:[%s1 + $0x30] sm:$0xf]
  %v134 = vld [vmem:[%s1 + $0x34] sm:$0xf]
  %v135 = vld [vmem:[%s1 + $0x38] sm:$0xf]
  %v136 = vld [vmem:[%s1 + $0x3c] sm:$0xf]
  %v137 = vld [vmem:[%s1 + $0x40] sm:$0xf]
  %v138 = vld [vmem:[%s1 + $0x44] sm:$0xf]
  %v139 = vld [vmem:[%s1 + $0x48] sm:$0xf]
  %v140 = vld [vmem:[%s1 + $0x4c] sm:$0xf]
  %v141 = vld [vmem:[%s1 + $0x50] sm:$0xf]
  %v142 = vld [vmem:[%s1 + $0x54] sm:$0xf]
  %v143 = vld [vmem:[%s1 + $0x58] sm:$0xf]
  %v144 = vld [vmem:[%s1 + $0x5c] sm:$0xf]
  %v145 = vld [vmem:[%s1 + $0x60] sm:$0xf]
  %v146 = vld [vmem:[%s1 + $0x64] sm:$0xf]
  %v147 = vld [vmem:[%s1 + $0x68] sm:$0xf]
  %v148 = vld [vmem:[%s1 + $0x6c] sm:$0xf]
  %v149 = vld [vmem:[%s1 + $0x70] sm:$0xf]
  %v150 = vld [vmem:[%s1 + $0x74] sm:$0xf]
  %v151 = vld [vmem:[%s1 + $0x78] sm:$0xf]
  %v152 = vld [vmem:[%s1 + $0x7c] sm:$0xf]
  %v185 = vunpack.c.l.b16 %v89
  %v186 = vunpack.c.h.b16 %v89
  %v187 = vunpack.c.l.b16 %v90
  %v188 = vunpack.c.h.b16 %v90
  %v189 = vunpack.c.l.b16 %v91
  %v190 = vunpack.c.h.b16 %v91
  %v191 = vunpack.c.l.b16 %v92
  %v192 = vunpack.c.h.b16 %v92
  %v193 = vunpack.c.l.b16 %v93
  %v194 = vunpack.c.h.b16 %v93
  %v195 = vunpack.c.l.b16 %v94
  %v196 = vunpack.c.h.b16 %v94
  %v197 = vunpack.c.l.b16 %v95
  %v198 = vunpack.c.h.b16 %v95
  %v199 = vunpack.c.l.b16 %v96
  %v200 = vunpack.c.h.b16 %v96
  %v201 = vunpack.c.l.b16 %v97
  %v202 = vunpack.c.h.b16 %v97
  %v203 = vunpack.c.l.b16 %v98
  %v204 = vunpack.c.h.b16 %v98
  %v205 = vunpack.c.l.b16 %v99
  %v206 = vunpack.c.h.b16 %v99
  %v207 = vunpack.c.l.b16 %v100
  %v208 = vunpack.c.h.b16 %v100
  %v209 = vunpack.c.l.b16 %v101
  %v210 = vunpack.c.h.b16 %v101
  %v211 = vunpack.c.l.b16 %v102
  %v212 = vunpack.c.h.b16 %v102
  %v213 = vunpack.c.l.b16 %v103
  %v214 = vunpack.c.h.b16 %v103
  %v215 = vunpack.c.l.b16 %v104
  %v216 = vunpack.c.h.b16 %v104
  %v217 = vunpack.c.l.b16 %v105
  %v218 = vunpack.c.h.b16 %v105
  %v219 = vunpack.c.l.b16 %v106
  %v220 = vunpack.c.h.b16 %v106
  %v221 = vunpack.c.l.b16 %v107
  %v222 = vunpack.c.h.b16 %v107
  %v223 = vunpack.c.l.b16 %v108
  %v224 = vunpack.c.h.b16 %v108
  %v225 = vunpack.c.l.b16 %v109
  %v226 = vunpack.c.h.b16 %v109
  %v227 = vunpack.c.l.b16 %v110
  %v228 = vunpack.c.h.b16 %v110
  %v229 = vunpack.c.l.b16 %v111
  %v230 = vunpack.c.h.b16 %v111
  %v231 = vunpack.c.l.b16 %v112
  %v232 = vunpack.c.h.b16 %v112
  %v233 = vunpack.c.l.b16 %v113
  %v234 = vunpack.c.h.b16 %v113
  %v235 = vunpack.c.l.b16 %v114
  %v236 = vunpack.c.h.b16 %v114
  %v237 = vunpack.c.l.b16 %v115
  %v238 = vunpack.c.h.b16 %v115
  %v239 = vunpack.c.l.b16 %v116
  %v240 = vunpack.c.h.b16 %v116
  %v241 = vunpack.c.l.b16 %v117
  %v242 = vunpack.c.h.b16 %v117
  %v243 = vunpack.c.l.b16 %v118
  %v244 = vunpack.c.h.b16 %v118
  %v245 = vunpack.c.l.b16 %v119
  %v246 = vunpack.c.h.b16 %v119
  %v247 = vunpack.c.l.b16 %v120
  %v248 = vunpack.c.h.b16 %v120
  %v249 = vpack.c.b16 %v187, %v185
  %v250 = vpack.c.b16 %v188, %v186
  %v251 = vpack.c.b16 %v191, %v189
  %v252 = vpack.c.b16 %v192, %v190
  %v253 = vpack.c.b16 %v195, %v193
  %v254 = vpack.c.b16 %v196, %v194
  %v255 = vpack.c.b16 %v199, %v197
  %v256 = vpack.c.b16 %v200, %v198
  %v257 = vpack.c.b16 %v203, %v201
  %v258 = vpack.c.b16 %v204, %v202
  %v259 = vpack.c.b16 %v207, %v205
  %v260 = vpack.c.b16 %v208, %v206
  %v261 = vpack.c.b16 %v211, %v209
  %v262 = vpack.c.b16 %v212, %v210
  %v263 = vpack.c.b16 %v215, %v213
  %v264 = vpack.c.b16 %v216, %v214
  %v265 = vpack.c.b16 %v219, %v217
  %v266 = vpack.c.b16 %v220, %v218
  %v267 = vpack.c.b16 %v223, %v221
  %v268 = vpack.c.b16 %v224, %v222
  %v269 = vpack.c.b16 %v227, %v225
  %v270 = vpack.c.b16 %v228, %v226
  %v271 = vpack.c.b16 %v231, %v229
  %v272 = vpack.c.b16 %v232, %v230
  %v273 = vpack.c.b16 %v235, %v233
  %v274 = vpack.c.b16 %v236, %v234
  %v275 = vpack.c.b16 %v239, %v237
  %v276 = vpack.c.b16 %v240, %v238
  %v277 = vpack.c.b16 %v243, %v241
  %v278 = vpack.c.b16 %v244, %v242
  %v279 = vpack.c.b16 %v247, %v245
  %v280 = vpack.c.b16 %v248, %v246
  %v345 = vunpack.c.l.b16 %v121
  %v346 = vunpack.c.l.b16 %v122
  %v347 = vunpack.c.l.b16 %v123
  %v348 = vunpack.c.l.b16 %v124
  %v349 = vunpack.c.l.b16 %v125
  %v350 = vunpack.c.l.b16 %v126
  %v351 = vunpack.c.l.b16 %v127
  %v352 = vunpack.c.l.b16 %v128
  %v353 = vunpack.c.l.b16 %v129
  %v354 = vunpack.c.l.b16 %v130
  %v355 = vunpack.c.l.b16 %v131
  %v356 = vunpack.c.l.b16 %v132
  %v357 = vunpack.c.l.b16 %v133
  %v358 = vunpack.c.l.b16 %v134
  %v359 = vunpack.c.l.b16 %v135
  %v360 = vunpack.c.l.b16 %v136
  %v361 = vunpack.c.l.b16 %v137
  %v362 = vunpack.c.l.b16 %v138
  %v363 = vunpack.c.l.b16 %v139
  %v364 = vunpack.c.l.b16 %v140
  %v365 = vunpack.c.l.b16 %v141
  %v366 = vunpack.c.l.b16 %v142
  %v367 = vunpack.c.l.b16 %v143
  %v368 = vunpack.c.l.b16 %v144
  %v369 = vunpack.c.l.b16 %v145
  %v370 = vunpack.c.l.b16 %v146
  %v371 = vunpack.c.l.b16 %v147
  %v372 = vunpack.c.l.b16 %v148
  %v373 = vunpack.c.l.b16 %v149
  %v374 = vunpack.c.l.b16 %v150
  %v375 = vunpack.c.l.b16 %v151
  %v376 = vunpack.c.l.b16 %v152
  %v377 = vpack.c.b16 %v346, %v345
  %v378 = vpack.c.b16 %v348, %v347
  %v379 = vpack.c.b16 %v350, %v349
  %v380 = vpack.c.b16 %v352, %v351
  %v381 = vpack.c.b16 %v354, %v353
  %v382 = vpack.c.b16 %v356, %v355
  %v383 = vpack.c.b16 %v358, %v357
  %v384 = vpack.c.b16 %v360, %v359
  %v385 = vpack.c.b16 %v362, %v361
  %v386 = vpack.c.b16 %v364, %v363
  %v387 = vpack.c.b16 %v366, %v365
  %v388 = vpack.c.b16 %v368, %v367
  %v389 = vpack.c.b16 %v370, %v369
  %v390 = vpack.c.b16 %v372, %v371
  %v391 = vpack.c.b16 %v374, %v373
  %v392 = vpack.c.b16 %v376, %v375
  %409 = vmatprep.subr.bf16.mxu0 0
  %410 = vmatpush1.bf16.msra.mxu0 %v384
  %411 = vmatprep.subr.bf16.mxu0 0
  %412 = vmatpush1.bf16.msra.mxu0 %v383
  %413 = vmatprep.subr.bf16.mxu0 0
  %414 = vmatpush1.bf16.msra.mxu0 %v382
  %415 = vmatprep.subr.bf16.mxu0 0
  %416 = vmatpush1.bf16.msra.mxu0 %v381
  %417 = vmatprep.subr.bf16.mxu0 0
  %418 = vmatpush1.bf16.msra.mxu0 %v380
  %419 = vmatprep.subr.bf16.mxu0 0
  %420 = vmatpush1.bf16.msra.mxu0 %v379
  %421 = vmatprep.subr.bf16.mxu0 0
  %422 = vmatpush1.bf16.msra.mxu0 %v378
  %423 = vmatprep.subr.bf16.mxu0 0
  %424 = vmatpush1.bf16.msra.mxu0 %v377
  %425 = vmatprep.subr.bf16.mxu0 0
  %426 = vmatpush2.bf16.msra.mxu0 %v392
  %427 = vmatprep.subr.bf16.mxu0 0
  %428 = vmatpush2.bf16.msra.mxu0 %v391
  %429 = vmatprep.subr.bf16.mxu0 0
  %430 = vmatpush2.bf16.msra.mxu0 %v390
  %431 = vmatprep.subr.bf16.mxu0 0
  %432 = vmatpush2.bf16.msra.mxu0 %v389
  %433 = vmatprep.subr.bf16.mxu0 0
  %434 = vmatpush2.bf16.msra.mxu0 %v388
  %435 = vmatprep.subr.bf16.mxu0 0
  %436 = vmatpush2.bf16.msra.mxu0 %v387
  %437 = vmatprep.subr.bf16.mxu0 0
  %438 = vmatpush2.bf16.msra.mxu0 %v386
  %439 = vmatprep.subr.bf16.mxu0 0
  %440 = vmatpush2.bf16.msra.mxu0 %v385
  %441 = vmatprep.mubr.bf16.mxu0 %v250
  %442 = vmatmul.mubr.bf16.gmra.mxu0 %v249
  %v443 = vpop.f32.mrf.mxu0
  %v444 = vadd.f32 0.0, %v443
  %v445 = vpop.f32.mrf.mxu0
  %v446 = vpop.f32.mrf.mxu0
  %v447 = vadd.f32 0.0, %v446
  %v448 = vpop.f32.mrf.mxu0
  %449 = vmatprep.mubr.bf16.mxu0 %v252
  %450 = vmatmul.mubr.bf16.gmra.mxu0 %v251
  %v451 = vpop.f32.mrf.mxu0
  %v452 = vadd.f32 0.0, %v451
  %v453 = vpop.f32.mrf.mxu0
  %v454 = vpop.f32.mrf.mxu0
  %v455 = vadd.f32 0.0, %v454
  %v456 = vpop.f32.mrf.mxu0
  %457 = vmatprep.mubr.bf16.mxu0 %v254
  %458 = vmatmul.mubr.bf16.gmra.mxu0 %v253
  %v459 = vpop.f32.mrf.mxu0
  %v460 = vadd.f32 0.0, %v459
  %v461 = vpop.f32.mrf.mxu0
  %v462 = vpop.f32.mrf.mxu0
  %v463 = vadd.f32 0.0, %v462
  %v464 = vpop.f32.mrf.mxu0
  %465 = vmatprep.mubr.bf16.mxu0 %v256
  %466 = vmatmul.mubr.bf16.gmra.mxu0 %v255
  %v467 = vpop.f32.mrf.mxu0
  %v468 = vadd.f32 0.0, %v467
  %v469 = vpop.f32.mrf.mxu0
  %v470 = vpop.f32.mrf.mxu0
  %v471 = vadd.f32 0.0, %v470
  %v472 = vpop.f32.mrf.mxu0
  %473 = vmatprep.mubr.bf16.mxu0 %v258
  %474 = vmatmul.mubr.bf16.gmra.mxu0 %v257
  %v475 = vpop.f32.mrf.mxu0
  %v476 = vadd.f32 0.0, %v475
  %v477 = vpop.f32.mrf.mxu0
  %v478 = vpop.f32.mrf.mxu0
  %v479 = vadd.f32 0.0, %v478
  %v480 = vpop.f32.mrf.mxu0
  %481 = vmatprep.mubr.bf16.mxu0 %v260
  %482 = vmatmul.mubr.bf16.gmra.mxu0 %v259
  %v483 = vpop.f32.mrf.mxu0
  %v484 = vadd.f32 0.0, %v483
  %v485 = vpop.f32.mrf.mxu0
  %v486 = vpop.f32.mrf.mxu0
  %v487 = vadd.f32 0.0, %v486
  %v488 = vpop.f32.mrf.mxu0
  %489 = vmatprep.mubr.bf16.mxu0 %v262
  %490 = vmatmul.mubr.bf16.gmra.mxu0 %v261
  %v491 = vpop.f32.mrf.mxu0
  %v492 = vadd.f32 0.0, %v491
  %v493 = vpop.f32.mrf.mxu0
  %v494 = vpop.f32.mrf.mxu0
  %v495 = vadd.f32 0.0, %v494
  %v496 = vpop.f32.mrf.mxu0
  %497 = vmatprep.mubr.bf16.mxu0 %v264
  %498 = vmatmul.mubr.bf16.gmra.mxu0 %v263
  %v499 = vpop.f32.mrf.mxu0
  %v500 = vadd.f32 0.0, %v499
  %v501 = vpop.f32.mrf.mxu0
  %v502 = vpop.f32.mrf.mxu0
  %v503 = vadd.f32 0.0, %v502
  %v504 = vpop.f32.mrf.mxu0
  %505 = vmatprep.mubr.bf16.mxu0 %v266
  %506 = vmatmul.mubr.bf16.gmra.mxu0 %v265
  %v507 = vpop.f32.mrf.mxu0
  %v508 = vadd.f32 0.0, %v507
  %v509 = vpop.f32.mrf.mxu0
  %v510 = vpop.f32.mrf.mxu0
  %v511 = vadd.f32 0.0, %v510
  %v512 = vpop.f32.mrf.mxu0
  %513 = vmatprep.mubr.bf16.mxu0 %v268
  %514 = vmatmul.mubr.bf16.gmra.mxu0 %v267
  %v515 = vpop.f32.mrf.mxu0
  %v516 = vadd.f32 0.0, %v515
  %v517 = vpop.f32.mrf.mxu0
  %v518 = vpop.f32.mrf.mxu0
  %v519 = vadd.f32 0.0, %v518
  %v520 = vpop.f32.mrf.mxu0
  %521 = vmatprep.mubr.bf16.mxu0 %v270
  %522 = vmatmul.mubr.bf16.gmra.mxu0 %v269
  %v523 = vpop.f32.mrf.mxu0
  %v524 = vadd.f32 0.0, %v523
  %v525 = vpop.f32.mrf.mxu0
  %v526 = vpop.f32.mrf.mxu0
  %v527 = vadd.f32 0.0, %v526
  %v528 = vpop.f32.mrf.mxu0
  %529 = vmatprep.mubr.bf16.mxu0 %v272
  %530 = vmatmul.mubr.bf16.gmra.mxu0 %v271
  %v531 = vpop.f32.mrf.mxu0
  %v532 = vadd.f32 0.0, %v531
  %v533 = vpop.f32.mrf.mxu0
  %v534 = vpop.f32.mrf.mxu0
  %v535 = vadd.f32 0.0, %v534
  %v536 = vpop.f32.mrf.mxu0
  %537 = vmatprep.mubr.bf16.mxu0 %v274
  %538 = vmatmul.mubr.bf16.gmra.mxu0 %v273
  %v539 = vpop.f32.mrf.mxu0
  %v540 = vadd.f32 0.0, %v539
  %v541 = vpop.f32.mrf.mxu0
  %v542 = vpop.f32.mrf.mxu0
  %v543 = vadd.f32 0.0, %v542
  %v544 = vpop.f32.mrf.mxu0
  %545 = vmatprep.mubr.bf16.mxu0 %v276
  %546 = vmatmul.mubr.bf16.gmra.mxu0 %v275
  %v547 = vpop.f32.mrf.mxu0
  %v548 = vadd.f32 0.0, %v547
  %v549 = vpop.f32.mrf.mxu0
  %v550 = vpop.f32.mrf.mxu0
  %v551 = vadd.f32 0.0, %v550
  %v552 = vpop.f32.mrf.mxu0
  %553 = vmatprep.mubr.bf16.mxu0 %v278
  %554 = vmatmul.mubr.bf16.gmra.mxu0 %v277
  %v555 = vpop.f32.mrf.mxu0
  %v556 = vadd.f32 0.0, %v555
  %v557 = vpop.f32.mrf.mxu0
  %v558 = vpop.f32.mrf.mxu0
  %v559 = vadd.f32 0.0, %v558
  %v560 = vpop.f32.mrf.mxu0
  %561 = vmatprep.mubr.bf16.mxu0 %v280
  %562 = vmatmul.mubr.bf16.gmra.mxu0 %v279
  %v563 = vpop.f32.mrf.mxu0
  %v564 = vadd.f32 0.0, %v563
  %v565 = vpop.f32.mrf.mxu0
  %v566 = vpop.f32.mrf.mxu0
  %v567 = vadd.f32 0.0, %v566
  %v568 = vpop.f32.mrf.mxu0
  %569 = vdwg.mxu0
  %v570 = vadd.f32 %v57, %v444
  %v571 = vadd.f32 %v58, %v447
  %v572 = vadd.f32 %v59, %v452
  %v573 = vadd.f32 %v60, %v455
  %v574 = vadd.f32 %v61, %v460
  %v575 = vadd.f32 %v62, %v463
  %v576 = vadd.f32 %v63, %v468
  %v577 = vadd.f32 %v64, %v471
  %v578 = vadd.f32 %v65, %v476
  %v579 = vadd.f32 %v66, %v479
  %v580 = vadd.f32 %v67, %v484
  %v581 = vadd.f32 %v68, %v487
  %v582 = vadd.f32 %v69, %v492
  %v583 = vadd.f32 %v70, %v495
  %v584 = vadd.f32 %v71, %v500
  %v585 = vadd.f32 %v72, %v503
  %v586 = vadd.f32 %v73, %v508
  %v587 = vadd.f32 %v74, %v511
  %v588 = vadd.f32 %v75, %v516
  %v589 = vadd.f32 %v76, %v519
  %v590 = vadd.f32 %v77, %v524
  %v591 = vadd.f32 %v78, %v527
  %v592 = vadd.f32 %v79, %v532
  %v593 = vadd.f32 %v80, %v535
  %v594 = vadd.f32 %v81, %v540
  %v595 = vadd.f32 %v82, %v543
  %v596 = vadd.f32 %v83, %v548
  %v597 = vadd.f32 %v84, %v551
  %v598 = vadd.f32 %v85, %v556
  %v599 = vadd.f32 %v86, %v559
  %v600 = vadd.f32 %v87, %v564
  %v601 = vadd.f32 %v88, %v567
  %602 = vst [vmem:[#allocation2] sm:$0xff] %v570
  %603 = vst [vmem:[#allocation2 + $0x8] sm:$0xff] %v571
  %604 = vst [vmem:[#allocation2 + $0x10] sm:$0xff] %v572
  %605 = vst [vmem:[#allocation2 + $0x18] sm:$0xff] %v573
  %606 = vst [vmem:[#allocation2 + $0x20] sm:$0xff] %v574
  %607 = vst [vmem:[#allocation2 + $0x28] sm:$0xff] %v575
  %608 = vst [vmem:[#allocation2 + $0x30] sm:$0xff] %v576
  %609 = vst [vmem:[#allocation2 + $0x38] sm:$0xff] %v577
  %610 = vst [vmem:[#allocation2 + $0x40] sm:$0xff] %v578
  %611 = vst [vmem:[#allocation2 + $0x48] sm:$0xff] %v579
  %612 = vst [vmem:[#allocation2 + $0x50] sm:$0xff] %v580
  %613 = vst [vmem:[#allocation2 + $0x58] sm:$0xff] %v581
  %614 = vst [vmem:[#allocation2 + $0x60] sm:$0xff] %v582
  %615 = vst [vmem:[#allocation2 + $0x68] sm:$0xff] %v583
  %616 = vst [vmem:[#allocation2 + $0x70] sm:$0xff] %v584
  %617 = vst [vmem:[#allocation2 + $0x78] sm:$0xff] %v585
  %618 = vst [vmem:[#allocation2 + $0x80] sm:$0xff] %v586
  %619 = vst [vmem:[#allocation2 + $0x88] sm:$0xff] %v587
  %620 = vst [vmem:[#allocation2 + $0x90] sm:$0xff] %v588
  %621 = vst [vmem:[#allocation2 + $0x98] sm:$0xff] %v589
  %622 = vst [vmem:[#allocation2 + $0xa0] sm:$0xff] %v590
  %623 = vst [vmem:[#allocation2 + $0xa8] sm:$0xff] %v591
  %624 = vst [vmem:[#allocation2 + $0xb0] sm:$0xff] %v592
  %625 = vst [vmem:[#allocation2 + $0xb8] sm:$0xff] %v593
  %626 = vst [vmem:[#allocation2 + $0xc0] sm:$0xff] %v594
  %627 = vst [vmem:[#allocation2 + $0xc8] sm:$0xff] %v595
  %628 = vst [vmem:[#allocation2 + $0xd0] sm:$0xff] %v596
  %629 = vst [vmem:[#allocation2 + $0xd8] sm:$0xff] %v597
  %630 = vst [vmem:[#allocation2 + $0xe0] sm:$0xff] %v598
  %631 = vst [vmem:[#allocation2 + $0xe8] sm:$0xff] %v599
  %632 = vst [vmem:[#allocation2 + $0xf0] sm:$0xff] %v600
  %633 = vst [vmem:[#allocation2 + $0xf8] sm:$0xff] %v601
  // Predicated region
  $region26: #{cheb_gcn2_forward.2} parent=0 // pred_check
    %p634 = pneg %p21
  $region27: #{cheb_gcn2_forward.2} parent=0 // pred_check_branch
    %636 = sbr.rel (%p634) target = $region29
  $region28: #{cheb_gcn2_forward.2} parent=0 // pred_region
    %v637 = vld [vmem:[%s2] sm:$0xf]
    %v638 = vld [vmem:[%s2 + $0x4] sm:$0xf]
    %v639 = vld [vmem:[%s2 + $0x8] sm:$0xf]
    %v640 = vld [vmem:[%s2 + $0xc] sm:$0xf]
    %v641 = vld [vmem:[%s2 + $0x10] sm:$0xf]
    %v642 = vld [vmem:[%s2 + $0x14] sm:$0xf]
    %v643 = vld [vmem:[%s2 + $0x18] sm:$0xf]
    %v644 = vld [vmem:[%s2 + $0x1c] sm:$0xf]
    %v645 = vld [vmem:[%s2 + $0x20] sm:$0xf]
    %v646 = vld [vmem:[%s2 + $0x24] sm:$0xf]
    %v647 = vld [vmem:[%s2 + $0x28] sm:$0xf]
    %v648 = vld [vmem:[%s2 + $0x2c] sm:$0xf]
    %v649 = vld [vmem:[%s2 + $0x30] sm:$0xf]
    %v650 = vld [vmem:[%s2 + $0x34] sm:$0xf]
    %v651 = vld [vmem:[%s2 + $0x38] sm:$0xf]
    %v652 = vld [vmem:[%s2 + $0x3c] sm:$0xf]
    %v653 = vld [vmem:[%s2 + $0x40] sm:$0xf]
    %v654 = vld [vmem:[%s2 + $0x44] sm:$0xf]
    %v655 = vld [vmem:[%s2 + $0x48] sm:$0xf]
    %v656 = vld [vmem:[%s2 + $0x4c] sm:$0xf]
    %v657 = vld [vmem:[%s2 + $0x50] sm:$0xf]
    %v658 = vld [vmem:[%s2 + $0x54] sm:$0xf]
    %v659 = vld [vmem:[%s2 + $0x58] sm:$0xf]
    %v660 = vld [vmem:[%s2 + $0x5c] sm:$0xf]
    %v661 = vld [vmem:[%s2 + $0x60] sm:$0xf]
    %v662 = vld [vmem:[%s2 + $0x64] sm:$0xf]
    %v663 = vld [vmem:[%s2 + $0x68] sm:$0xf]
    %v664 = vld [vmem:[%s2 + $0x6c] sm:$0xf]
    %v665 = vld [vmem:[%s2 + $0x70] sm:$0xf]
    %v666 = vld [vmem:[%s2 + $0x74] sm:$0xf]
    %v667 = vld [vmem:[%s2 + $0x78] sm:$0xf]
    %v668 = vld [vmem:[%s2 + $0x7c] sm:$0xf]
    %v669 = vld [vmem:[#allocation2] sm:$0xff]
    %v670 = vld [vmem:[#allocation2 + $0x8] sm:$0xff]
    %v671 = vld [vmem:[#allocation2 + $0x10] sm:$0xff]
    %v672 = vld [vmem:[#allocation2 + $0x18] sm:$0xff]
    %v673 = vld [vmem:[#allocation2 + $0x20] sm:$0xff]
    %v674 = vld [vmem:[#allocation2 + $0x28] sm:$0xff]
    %v675 = vld [vmem:[#allocation2 + $0x30] sm:$0xff]
    %v676 = vld [vmem:[#allocation2 + $0x38] sm:$0xff]
    %v677 = vld [vmem:[#allocation2 + $0x40] sm:$0xff]
    %v678 = vld [vmem:[#allocation2 + $0x48] sm:$0xff]
    %v679 = vld [vmem:[#allocation2 + $0x50] sm:$0xff]
    %v680 = vld [vmem:[#allocation2 + $0x58] sm:$0xff]
    %v681 = vld [vmem:[#allocation2 + $0x60] sm:$0xff]
    %v682 = vld [vmem:[#allocation2 + $0x68] sm:$0xff]
    %v683 = vld [vmem:[#allocation2 + $0x70] sm:$0xff]
    %v684 = vld [vmem:[#allocation2 + $0x78] sm:$0xff]
    %v685 = vld [vmem:[#allocation2 + $0x80] sm:$0xff]
    %v686 = vld [vmem:[#allocation2 + $0x88] sm:$0xff]
    %v687 = vld [vmem:[#allocation2 + $0x90] sm:$0xff]
    %v688 = vld [vmem:[#allocation2 + $0x98] sm:$0xff]
    %v689 = vld [vmem:[#allocation2 + $0xa0] sm:$0xff]
    %v690 = vld [vmem:[#allocation2 + $0xa8] sm:$0xff]
    %v691 = vld [vmem:[#allocation2 + $0xb0] sm:$0xff]
    %v692 = vld [vmem:[#allocation2 + $0xb8] sm:$0xff]
    %v693 = vld [vmem:[#allocation2 + $0xc0] sm:$0xff]
    %v694 = vld [vmem:[#allocation2 + $0xc8] sm:$0xff]
    %v695 = vld [vmem:[#allocation2 + $0xd0] sm:$0xff]
    %v696 = vld [vmem:[#allocation2 + $0xd8] sm:$0xff]
    %v697 = vld [vmem:[#allocation2 + $0xe0] sm:$0xff]
    %v698 = vld [vmem:[#allocation2 + $0xe8] sm:$0xff]
    %v699 = vld [vmem:[#allocation2 + $0xf0] sm:$0xff]
    %v700 = vld [vmem:[#allocation2 + $0xf8] sm:$0xff]
    %v701 = vpack.c.bf16 %v670, %v669
    %v702 = vpack.c.bf16 %v672, %v671
    %v703 = vpack.c.bf16 %v674, %v673
    %v704 = vpack.c.bf16 %v676, %v675
    %v705 = vpack.c.bf16 %v678, %v677
    %v706 = vpack.c.bf16 %v680, %v679
    %v707 = vpack.c.bf16 %v682, %v681
    %v708 = vpack.c.bf16 %v684, %v683
    %v709 = vpack.c.bf16 %v686, %v685
    %v710 = vpack.c.bf16 %v688, %v687
    %v711 = vpack.c.bf16 %v690, %v689
    %v712 = vpack.c.bf16 %v692, %v691
    %v713 = vpack.c.bf16 %v694, %v693
    %v714 = vpack.c.bf16 %v696, %v695
    %v715 = vpack.c.bf16 %v698, %v697
    %v716 = vpack.c.bf16 %v700, %v699
    %v749 = vunpack.c.l.b16 %v637
    %v750 = vunpack.c.l.b16 %v638
    %v751 = vunpack.c.l.b16 %v639
    %v752 = vunpack.c.l.b16 %v640
    %v753 = vunpack.c.l.b16 %v641
    %v754 = vunpack.c.l.b16 %v642
    %v755 = vunpack.c.l.b16 %v643
    %v756 = vunpack.c.l.b16 %v644
    %v757 = vunpack.c.l.b16 %v645
    %v758 = vunpack.c.l.b16 %v646
    %v759 = vunpack.c.l.b16 %v647
    %v760 = vunpack.c.l.b16 %v648
    %v761 = vunpack.c.l.b16 %v649
    %v762 = vunpack.c.l.b16 %v650
    %v763 = vunpack.c.l.b16 %v651
    %v764 = vunpack.c.l.b16 %v652
    %v765 = vunpack.c.l.b16 %v653
    %v766 = vunpack.c.l.b16 %v654
    %v767 = vunpack.c.l.b16 %v655
    %v768 = vunpack.c.l.b16 %v656
    %v769 = vunpack.c.l.b16 %v657
    %v770 = vunpack.c.l.b16 %v658
    %v771 = vunpack.c.l.b16 %v659
    %v772 = vunpack.c.l.b16 %v660
    %v773 = vunpack.c.l.b16 %v661
    %v774 = vunpack.c.l.b16 %v662
    %v775 = vunpack.c.l.b16 %v663
    %v776 = vunpack.c.l.b16 %v664
    %v777 = vunpack.c.l.b16 %v665
    %v778 = vunpack.c.l.b16 %v666
    %v779 = vunpack.c.l.b16 %v667
    %v780 = vunpack.c.l.b16 %v668
    %v781 = vpack.c.b16 %v750, %v749
    %v782 = vpack.c.b16 %v752, %v751
    %v783 = vpack.c.b16 %v754, %v753
    %v784 = vpack.c.b16 %v756, %v755
    %v785 = vpack.c.b16 %v758, %v757
    %v786 = vpack.c.b16 %v760, %v759
    %v787 = vpack.c.b16 %v762, %v761
    %v788 = vpack.c.b16 %v764, %v763
    %v789 = vpack.c.b16 %v766, %v765
    %v790 = vpack.c.b16 %v768, %v767
    %v791 = vpack.c.b16 %v770, %v769
    %v792 = vpack.c.b16 %v772, %v771
    %v793 = vpack.c.b16 %v774, %v773
    %v794 = vpack.c.b16 %v776, %v775
    %v795 = vpack.c.b16 %v778, %v777
    %v796 = vpack.c.b16 %v780, %v779
    %v813 = vld [vmem:[%s3] sm:$0xf]
    %v814 = vld [vmem:[%s3 + $0x4] sm:$0xf]
    %v815 = vld [vmem:[%s3 + $0x8] sm:$0xf]
    %v816 = vld [vmem:[%s3 + $0xc] sm:$0xf]
    %v817 = vld [vmem:[%s3 + $0x10] sm:$0xf]
    %v818 = vld [vmem:[%s3 + $0x14] sm:$0xf]
    %v819 = vld [vmem:[%s3 + $0x18] sm:$0xf]
    %v820 = vld [vmem:[%s3 + $0x1c] sm:$0xf]
    %v821 = vld [vmem:[%s3 + $0x20] sm:$0xf]
    %v822 = vld [vmem:[%s3 + $0x24] sm:$0xf]
    %v823 = vld [vmem:[%s3 + $0x28] sm:$0xf]
    %v824 = vld [vmem:[%s3 + $0x2c] sm:$0xf]
    %v825 = vld [vmem:[%s3 + $0x30] sm:$0xf]
    %v826 = vld [vmem:[%s3 + $0x34] sm:$0xf]
    %v827 = vld [vmem:[%s3 + $0x38] sm:$0xf]
    %v828 = vld [vmem:[%s3 + $0x3c] sm:$0xf]
    %v829 = vld [vmem:[%s3 + $0x40] sm:$0xf]
    %v830 = vld [vmem:[%s3 + $0x44] sm:$0xf]
    %v831 = vld [vmem:[%s3 + $0x48] sm:$0xf]
    %v832 = vld [vmem:[%s3 + $0x4c] sm:$0xf]
    %v833 = vld [vmem:[%s3 + $0x50] sm:$0xf]
    %v834 = vld [vmem:[%s3 + $0x54] sm:$0xf]
    %v835 = vld [vmem:[%s3 + $0x58] sm:$0xf]
    %v836 = vld [vmem:[%s3 + $0x5c] sm:$0xf]
    %v837 = vld [vmem:[%s3 + $0x60] sm:$0xf]
    %v838 = vld [vmem:[%s3 + $0x64] sm:$0xf]
    %v839 = vld [vmem:[%s3 + $0x68] sm:$0xf]
    %v840 = vld [vmem:[%s3 + $0x6c] sm:$0xf]
    %v841 = vld [vmem:[%s3 + $0x70] sm:$0xf]
    %v842 = vld [vmem:[%s3 + $0x74] sm:$0xf]
    %v843 = vld [vmem:[%s3 + $0x78] sm:$0xf]
    %v844 = vld [vmem:[%s3 + $0x7c] sm:$0xf]
    %v845 = vld [vmem:[%s4] sm:$0x1]
    %v847 = vlaneseq
    %v848 = vshrl.u32 %v847, 7
    %v849 = vsub.s32 0, %v848
    %v850 = vrot.slane %v845, %v849
    %v884 = vunpack.c.l.b16 %v813
    %v885 = vunpack.c.l.b16 %v814
    %v886 = vunpack.c.l.b16 %v815
    %v887 = vunpack.c.l.b16 %v816
    %v888 = vunpack.c.l.b16 %v817
    %v889 = vunpack.c.l.b16 %v818
    %v890 = vunpack.c.l.b16 %v819
    %v891 = vunpack.c.l.b16 %v820
    %v892 = vunpack.c.l.b16 %v821
    %v893 = vunpack.c.l.b16 %v822
    %v894 = vunpack.c.l.b16 %v823
    %v895 = vunpack.c.l.b16 %v824
    %v896 = vunpack.c.l.b16 %v825
    %v897 = vunpack.c.l.b16 %v826
    %v898 = vunpack.c.l.b16 %v827
    %v899 = vunpack.c.l.b16 %v828
    %v900 = vunpack.c.l.b16 %v829
    %v901 = vunpack.c.l.b16 %v830
    %v902 = vunpack.c.l.b16 %v831
    %v903 = vunpack.c.l.b16 %v832
    %v904 = vunpack.c.l.b16 %v833
    %v905 = vunpack.c.l.b16 %v834
    %v906 = vunpack.c.l.b16 %v835
    %v907 = vunpack.c.l.b16 %v836
    %v908 = vunpack.c.l.b16 %v837
    %v909 = vunpack.c.l.b16 %v838
    %v910 = vunpack.c.l.b16 %v839
    %v911 = vunpack.c.l.b16 %v840
    %v912 = vunpack.c.l.b16 %v841
    %v913 = vunpack.c.l.b16 %v842
    %v914 = vunpack.c.l.b16 %v843
    %v915 = vunpack.c.l.b16 %v844
    %v916 = vpack.c.b16 %v885, %v884
    %v917 = vpack.c.b16 %v887, %v886
    %v918 = vpack.c.b16 %v889, %v888
    %v919 = vpack.c.b16 %v891, %v890
    %v920 = vpack.c.b16 %v893, %v892
    %v921 = vpack.c.b16 %v895, %v894
    %v922 = vpack.c.b16 %v897, %v896
    %v923 = vpack.c.b16 %v899, %v898
    %v924 = vpack.c.b16 %v901, %v900
    %v925 = vpack.c.b16 %v903, %v902
    %v926 = vpack.c.b16 %v905, %v904
    %v927 = vpack.c.b16 %v907, %v906
    %v928 = vpack.c.b16 %v909, %v908
    %v929 = vpack.c.b16 %v911, %v910
    %v930 = vpack.c.b16 %v913, %v912
    %v931 = vpack.c.b16 %v915, %v914
    %948 = vmatprep.subr.bf16.mxu0 0
    %949 = vmatpush1.bf16.msra.mxu0 %v923
    %950 = vmatprep.subr.bf16.mxu0 0
    %951 = vmatpush1.bf16.msra.mxu0 %v922
    %952 = vmatprep.subr.bf16.mxu0 0
    %953 = vmatpush1.bf16.msra.mxu0 %v921
    %954 = vmatprep.subr.bf16.mxu0 0
    %955 = vmatpush1.bf16.msra.mxu0 %v920
    %956 = vmatprep.subr.bf16.mxu0 0
    %957 = vmatpush1.bf16.msra.mxu0 %v919
    %958 = vmatprep.subr.bf16.mxu0 0
    %959 = vmatpush1.bf16.msra.mxu0 %v918
    %960 = vmatprep.subr.bf16.mxu0 0
    %961 = vmatpush1.bf16.msra.mxu0 %v917
    %962 = vmatprep.subr.bf16.mxu0 0
    %963 = vmatpush1.bf16.msra.mxu0 %v916
    %964 = vmatprep.subr.bf16.mxu0 0
    %965 = vmatpush2.bf16.msra.mxu0 %v931
    %966 = vmatprep.subr.bf16.mxu0 0
    %967 = vmatpush2.bf16.msra.mxu0 %v930
    %968 = vmatprep.subr.bf16.mxu0 0
    %969 = vmatpush2.bf16.msra.mxu0 %v929
    %970 = vmatprep.subr.bf16.mxu0 0
    %971 = vmatpush2.bf16.msra.mxu0 %v928
    %972 = vmatprep.subr.bf16.mxu0 0
    %973 = vmatpush2.bf16.msra.mxu0 %v927
    %974 = vmatprep.subr.bf16.mxu0 0
    %975 = vmatpush2.bf16.msra.mxu0 %v926
    %976 = vmatprep.subr.bf16.mxu0 0
    %977 = vmatpush2.bf16.msra.mxu0 %v925
    %978 = vmatprep.subr.bf16.mxu0 0
    %979 = vmatpush2.bf16.msra.mxu0 %v924
    %980 = vmatprep.mubr.bf16.mxu0 %v701
    %981 = vmatmul.mubr.bf16.gmra.mxu0 %v781
    %v982 = vpop.f32.mrf.mxu0
    %v983 = vadd.f32 %v850, %v982
    %v984 = vpop.f32.mrf.mxu0
    %v985 = vpop.f32.mrf.mxu0
    %v986 = vadd.f32 %v850, %v985
    %v987 = vpop.f32.mrf.mxu0
    %988 = vmatprep.mubr.bf16.mxu0 %v702
    %989 = vmatmul.mubr.bf16.gmra.mxu0 %v782
    %v990 = vpop.f32.mrf.mxu0
    %v991 = vadd.f32 %v850, %v990
    %v992 = vpop.f32.mrf.mxu0
    %v993 = vpop.f32.mrf.mxu0
    %v994 = vadd.f32 %v850, %v993
    %v995 = vpop.f32.mrf.mxu0
    %996 = vmatprep.mubr.bf16.mxu0 %v703
    %997 = vmatmul.mubr.bf16.gmra.mxu0 %v783
    %v998 = vpop.f32.mrf.mxu0
    %v999 = vadd.f32 %v850, %v998
    %v1000 = vpop.f32.mrf.mxu0
    %v1001 = vpop.f32.mrf.mxu0
    %v1002 = vadd.f32 %v850, %v1001
    %v1003 = vpop.f32.mrf.mxu0
    %1004 = vmatprep.mubr.bf16.mxu0 %v704
    %1005 = vmatmul.mubr.bf16.gmra.mxu0 %v784
    %v1006 = vpop.f32.mrf.mxu0
    %v1007 = vadd.f32 %v850, %v1006
    %v1008 = vpop.f32.mrf.mxu0
    %v1009 = vpop.f32.mrf.mxu0
    %v1010 = vadd.f32 %v850, %v1009
    %v1011 = vpop.f32.mrf.mxu0
    %1012 = vmatprep.mubr.bf16.mxu0 %v705
    %1013 = vmatmul.mubr.bf16.gmra.mxu0 %v785
    %v1014 = vpop.f32.mrf.mxu0
    %v1015 = vadd.f32 %v850, %v1014
    %v1016 = vpop.f32.mrf.mxu0
    %v1017 = vpop.f32.mrf.mxu0
    %v1018 = vadd.f32 %v850, %v1017
    %v1019 = vpop.f32.mrf.mxu0
    %1020 = vmatprep.mubr.bf16.mxu0 %v706
    %1021 = vmatmul.mubr.bf16.gmra.mxu0 %v786
    %v1022 = vpop.f32.mrf.mxu0
    %v1023 = vadd.f32 %v850, %v1022
    %v1024 = vpop.f32.mrf.mxu0
    %v1025 = vpop.f32.mrf.mxu0
    %v1026 = vadd.f32 %v850, %v1025
    %v1027 = vpop.f32.mrf.mxu0
    %1028 = vmatprep.mubr.bf16.mxu0 %v707
    %1029 = vmatmul.mubr.bf16.gmra.mxu0 %v787
    %v1030 = vpop.f32.mrf.mxu0
    %v1031 = vadd.f32 %v850, %v1030
    %v1032 = vpop.f32.mrf.mxu0
    %v1033 = vpop.f32.mrf.mxu0
    %v1034 = vadd.f32 %v850, %v1033
    %v1035 = vpop.f32.mrf.mxu0
    %1036 = vmatprep.mubr.bf16.mxu0 %v708
    %1037 = vmatmul.mubr.bf16.gmra.mxu0 %v788
    %v1038 = vpop.f32.mrf.mxu0
    %v1039 = vadd.f32 %v850, %v1038
    %v1040 = vpop.f32.mrf.mxu0
    %v1041 = vpop.f32.mrf.mxu0
    %v1042 = vadd.f32 %v850, %v1041
    %v1043 = vpop.f32.mrf.mxu0
    %1044 = vmatprep.mubr.bf16.mxu0 %v709
    %1045 = vmatmul.mubr.bf16.gmra.mxu0 %v789
    %v1046 = vpop.f32.mrf.mxu0
    %v1047 = vadd.f32 %v850, %v1046
    %v1048 = vpop.f32.mrf.mxu0
    %v1049 = vpop.f32.mrf.mxu0
    %v1050 = vadd.f32 %v850, %v1049
    %v1051 = vpop.f32.mrf.mxu0
    %1052 = vmatprep.mubr.bf16.mxu0 %v710
    %1053 = vmatmul.mubr.bf16.gmra.mxu0 %v790
    %v1054 = vpop.f32.mrf.mxu0
    %v1055 = vadd.f32 %v850, %v1054
    %v1056 = vpop.f32.mrf.mxu0
    %v1057 = vpop.f32.mrf.mxu0
    %v1058 = vadd.f32 %v850, %v1057
    %v1059 = vpop.f32.mrf.mxu0
    %1060 = vmatprep.mubr.bf16.mxu0 %v711
    %1061 = vmatmul.mubr.bf16.gmra.mxu0 %v791
    %v1062 = vpop.f32.mrf.mxu0
    %v1063 = vadd.f32 %v850, %v1062
    %v1064 = vpop.f32.mrf.mxu0
    %v1065 = vpop.f32.mrf.mxu0
    %v1066 = vadd.f32 %v850, %v1065
    %v1067 = vpop.f32.mrf.mxu0
    %1068 = vmatprep.mubr.bf16.mxu0 %v712
    %1069 = vmatmul.mubr.bf16.gmra.mxu0 %v792
    %v1070 = vpop.f32.mrf.mxu0
    %v1071 = vadd.f32 %v850, %v1070
    %v1072 = vpop.f32.mrf.mxu0
    %v1073 = vpop.f32.mrf.mxu0
    %v1074 = vadd.f32 %v850, %v1073
    %v1075 = vpop.f32.mrf.mxu0
    %1076 = vmatprep.mubr.bf16.mxu0 %v713
    %1077 = vmatmul.mubr.bf16.gmra.mxu0 %v793
    %v1078 = vpop.f32.mrf.mxu0
    %v1079 = vadd.f32 %v850, %v1078
    %v1080 = vpop.f32.mrf.mxu0
    %v1081 = vpop.f32.mrf.mxu0
    %v1082 = vadd.f32 %v850, %v1081
    %v1083 = vpop.f32.mrf.mxu0
    %1084 = vmatprep.mubr.bf16.mxu0 %v714
    %1085 = vmatmul.mubr.bf16.gmra.mxu0 %v794
    %v1086 = vpop.f32.mrf.mxu0
    %v1087 = vadd.f32 %v850, %v1086
    %v1088 = vpop.f32.mrf.mxu0
    %v1089 = vpop.f32.mrf.mxu0
    %v1090 = vadd.f32 %v850, %v1089
    %v1091 = vpop.f32.mrf.mxu0
    %1092 = vmatprep.mubr.bf16.mxu0 %v715
    %1093 = vmatmul.mubr.bf16.gmra.mxu0 %v795
    %v1094 = vpop.f32.mrf.mxu0
    %v1095 = vadd.f32 %v850, %v1094
    %v1096 = vpop.f32.mrf.mxu0
    %v1097 = vpop.f32.mrf.mxu0
    %v1098 = vadd.f32 %v850, %v1097
    %v1099 = vpop.f32.mrf.mxu0
    %1100 = vmatprep.mubr.bf16.mxu0 %v716
    %1101 = vmatmul.mubr.bf16.gmra.mxu0 %v796
    %v1102 = vpop.f32.mrf.mxu0
    %v1103 = vadd.f32 %v850, %v1102
    %v1104 = vpop.f32.mrf.mxu0
    %v1105 = vpop.f32.mrf.mxu0
    %v1106 = vadd.f32 %v850, %v1105
    %v1107 = vpop.f32.mrf.mxu0
    %1108 = vdwg.mxu0
    %v1109 = vmax.f32 %v983, 0.0
    %v1110 = vmax.f32 %v986, 0.0
    %v1111 = vmax.f32 %v991, 0.0
    %v1112 = vmax.f32 %v994, 0.0
    %v1113 = vmax.f32 %v999, 0.0
    %v1114 = vmax.f32 %v1002, 0.0
    %v1115 = vmax.f32 %v1007, 0.0
    %v1116 = vmax.f32 %v1010, 0.0
    %v1117 = vmax.f32 %v1015, 0.0
    %v1118 = vmax.f32 %v1018, 0.0
    %v1119 = vmax.f32 %v1023, 0.0
    %v1120 = vmax.f32 %v1026, 0.0
    %v1121 = vmax.f32 %v1031, 0.0
    %v1122 = vmax.f32 %v1034, 0.0
    %v1123 = vmax.f32 %v1039, 0.0
    %v1124 = vmax.f32 %v1042, 0.0
    %v1125 = vmax.f32 %v1047, 0.0
    %v1126 = vmax.f32 %v1050, 0.0
    %v1127 = vmax.f32 %v1055, 0.0
    %v1128 = vmax.f32 %v1058, 0.0
    %v1129 = vmax.f32 %v1063, 0.0
    %v1130 = vmax.f32 %v1066, 0.0
    %v1131 = vmax.f32 %v1071, 0.0
    %v1132 = vmax.f32 %v1074, 0.0
    %v1133 = vmax.f32 %v1079, 0.0
    %v1134 = vmax.f32 %v1082, 0.0
    %v1135 = vmax.f32 %v1087, 0.0
    %v1136 = vmax.f32 %v1090, 0.0
    %v1137 = vmax.f32 %v1095, 0.0
    %v1138 = vmax.f32 %v1098, 0.0
    %v1139 = vmax.f32 %v1103, 0.0
    %v1140 = vmax.f32 %v1106, 0.0
    %v1141 = vpack.c.bf16 %v1110, %v1109
    %v1142 = vpack.c.bf16 %v1112, %v1111
    %v1143 = vpack.c.bf16 %v1114, %v1113
    %v1144 = vpack.c.bf16 %v1116, %v1115
    %v1145 = vpack.c.bf16 %v1118, %v1117
    %v1146 = vpack.c.bf16 %v1120, %v1119
    %v1147 = vpack.c.bf16 %v1122, %v1121
    %v1148 = vpack.c.bf16 %v1124, %v1123
    %v1149 = vpack.c.bf16 %v1126, %v1125
    %v1150 = vpack.c.bf16 %v1128, %v1127
    %v1151 = vpack.c.bf16 %v1130, %v1129
    %v1152 = vpack.c.bf16 %v1132, %v1131
    %v1153 = vpack.c.bf16 %v1134, %v1133
    %v1154 = vpack.c.bf16 %v1136, %v1135
    %v1155 = vpack.c.bf16 %v1138, %v1137
    %v1156 = vpack.c.bf16 %v1140, %v1139
    %v1173 = vunpack.c.l.b16 %v1141
    %v1174 = vunpack.c.h.b16 %v1141
    %v1175 = vunpack.c.l.b16 %v1142
    %v1176 = vunpack.c.h.b16 %v1142
    %v1177 = vunpack.c.l.b16 %v1143
    %v1178 = vunpack.c.h.b16 %v1143
    %v1179 = vunpack.c.l.b16 %v1144
    %v1180 = vunpack.c.h.b16 %v1144
    %v1181 = vunpack.c.l.b16 %v1145
    %v1182 = vunpack.c.h.b16 %v1145
    %v1183 = vunpack.c.l.b16 %v1146
    %v1184 = vunpack.c.h.b16 %v1146
    %v1185 = vunpack.c.l.b16 %v1147
    %v1186 = vunpack.c.h.b16 %v1147
    %v1187 = vunpack.c.l.b16 %v1148
    %v1188 = vunpack.c.h.b16 %v1148
    %v1189 = vunpack.c.l.b16 %v1149
    %v1190 = vunpack.c.h.b16 %v1149
    %v1191 = vunpack.c.l.b16 %v1150
    %v1192 = vunpack.c.h.b16 %v1150
    %v1193 = vunpack.c.l.b16 %v1151
    %v1194 = vunpack.c.h.b16 %v1151
    %v1195 = vunpack.c.l.b16 %v1152
    %v1196 = vunpack.c.h.b16 %v1152
    %v1197 = vunpack.c.l.b16 %v1153
    %v1198 = vunpack.c.h.b16 %v1153
    %v1199 = vunpack.c.l.b16 %v1154
    %v1200 = vunpack.c.h.b16 %v1154
    %v1201 = vunpack.c.l.b16 %v1155
    %v1202 = vunpack.c.h.b16 %v1155
    %v1203 = vunpack.c.l.b16 %v1156
    %v1204 = vunpack.c.h.b16 %v1156
    %v1205 = vpack.c.b16 %v1173, %v1173
    %v1206 = vpack.c.b16 %v1174, %v1174
    %v1207 = vpack.c.b16 %v1175, %v1175
    %v1208 = vpack.c.b16 %v1176, %v1176
    %v1209 = vpack.c.b16 %v1177, %v1177
    %v1210 = vpack.c.b16 %v1178, %v1178
    %v1211 = vpack.c.b16 %v1179, %v1179
    %v1212 = vpack.c.b16 %v1180, %v1180
    %v1213 = vpack.c.b16 %v1181, %v1181
    %v1214 = vpack.c.b16 %v1182, %v1182
    %v1215 = vpack.c.b16 %v1183, %v1183
    %v1216 = vpack.c.b16 %v1184, %v1184
    %v1217 = vpack.c.b16 %v1185, %v1185
    %v1218 = vpack.c.b16 %v1186, %v1186
    %v1219 = vpack.c.b16 %v1187, %v1187
    %v1220 = vpack.c.b16 %v1188, %v1188
    %v1221 = vpack.c.b16 %v1189, %v1189
    %v1222 = vpack.c.b16 %v1190, %v1190
    %v1223 = vpack.c.b16 %v1191, %v1191
    %v1224 = vpack.c.b16 %v1192, %v1192
    %v1225 = vpack.c.b16 %v1193, %v1193
    %v1226 = vpack.c.b16 %v1194, %v1194
    %v1227 = vpack.c.b16 %v1195, %v1195
    %v1228 = vpack.c.b16 %v1196, %v1196
    %v1229 = vpack.c.b16 %v1197, %v1197
    %v1230 = vpack.c.b16 %v1198, %v1198
    %v1231 = vpack.c.b16 %v1199, %v1199
    %v1232 = vpack.c.b16 %v1200, %v1200
    %v1233 = vpack.c.b16 %v1201, %v1201
    %v1234 = vpack.c.b16 %v1202, %v1202
    %v1235 = vpack.c.b16 %v1203, %v1203
    %v1236 = vpack.c.b16 %v1204, %v1204
    %1269 = vst [vmem:[%s5] sm:$0xf] %v1205
    %1270 = vst [vmem:[%s5 + $0x4] sm:$0xf] %v1206
    %1271 = vst [vmem:[%s5 + $0x8] sm:$0xf] %v1207
    %1272 = vst [vmem:[%s5 + $0xc] sm:$0xf] %v1208
    %1273 = vst [vmem:[%s5 + $0x10] sm:$0xf] %v1209
    %1274 = vst [vmem:[%s5 + $0x14] sm:$0xf] %v1210
    %1275 = vst [vmem:[%s5 + $0x18] sm:$0xf] %v1211
    %1276 = vst [vmem:[%s5 + $0x1c] sm:$0xf] %v1212
    %1277 = vst [vmem:[%s5 + $0x20] sm:$0xf] %v1213
    %1278 = vst [vmem:[%s5 + $0x24] sm:$0xf] %v1214
    %1279 = vst [vmem:[%s5 + $0x28] sm:$0xf] %v1215
    %1280 = vst [vmem:[%s5 + $0x2c] sm:$0xf] %v1216
    %1281 = vst [vmem:[%s5 + $0x30] sm:$0xf] %v1217
    %1282 = vst [vmem:[%s5 + $0x34] sm:$0xf] %v1218
    %1283 = vst [vmem:[%s5 + $0x38] sm:$0xf] %v1219
    %1284 = vst [vmem:[%s5 + $0x3c] sm:$0xf] %v1220
    %1285 = vst [vmem:[%s5 + $0x40] sm:$0xf] %v1221
    %1286 = vst [vmem:[%s5 + $0x44] sm:$0xf] %v1222
    %1287 = vst [vmem:[%s5 + $0x48] sm:$0xf] %v1223
    %1288 = vst [vmem:[%s5 + $0x4c] sm:$0xf] %v1224
    %1289 = vst [vmem:[%s5 + $0x50] sm:$0xf] %v1225
    %1290 = vst [vmem:[%s5 + $0x54] sm:$0xf] %v1226
    %1291 = vst [vmem:[%s5 + $0x58] sm:$0xf] %v1227
    %1292 = vst [vmem:[%s5 + $0x5c] sm:$0xf] %v1228
    %1293 = vst [vmem:[%s5 + $0x60] sm:$0xf] %v1229
    %1294 = vst [vmem:[%s5 + $0x64] sm:$0xf] %v1230
    %1295 = vst [vmem:[%s5 + $0x68] sm:$0xf] %v1231
    %1296 = vst [vmem:[%s5 + $0x6c] sm:$0xf] %v1232
    %1297 = vst [vmem:[%s5 + $0x70] sm:$0xf] %v1233
    %1298 = vst [vmem:[%s5 + $0x74] sm:$0xf] %v1234
    %1299 = vst [vmem:[%s5 + $0x78] sm:$0xf] %v1235
    %1300 = vst [vmem:[%s5 + $0x7c] sm:$0xf] %v1236
  $region29: #{cheb_gcn2_forward.2} parent=0 // pred_fallthru
    _
  // Predicated region
  $region30: #{cheb_gcn2_forward.2} parent=0 // pred_check
    _
  $region31: #{cheb_gcn2_forward.2} parent=0 // pred_check_branch
    %1302 = sbr.rel (0) target = $region33
  $region32: #{cheb_gcn2_forward.2} parent=0 // pred_region
    _
  $region33: #{cheb_gcn2_forward.2} parent=0 // pred_fallthru
    _
  // Predicated region
  $region34: #{cheb_gcn2_forward.2} parent=0 // pred_check
    _
  $region35: #{cheb_gcn2_forward.2} parent=0 // pred_check_branch
    %1304 = sbr.rel (0) target = $region37
  $region36: #{cheb_gcn2_forward.2} parent=0 // pred_region
    _
  $region37: #{cheb_gcn2_forward.2} parent=0 // pred_fallthru
    _

</llo_original>
